<compile_context>
chip_gen: v6e
topology: v6e:2x2x1
jax: 0.10.0
libtpu: 0.0.40
codegen_flags: <defaults>
</compile_context>

<pallas_src>
import functools

import jax
import jax.numpy as jnp
import numpy as np
from jax import lax
from jax.experimental import pallas as pl
from jax.experimental.pallas import tpu as pltpu


def _pam_kernel(x_ref, wq_ref, bq_ref, wkT_ref, bk_ref, wv_ref, bv_ref,
                gamma_ref, out_ref, q_s, k_s, v_s, m_s, l_s, acc_s,
                *, tq, tk):
    qt = pl.program_id(1)
    n = x_ref.shape[1]
    nk = n // tk

    # ---- Q/K/V projections: once per batch element (query-tile 0 only). ----
    @pl.when(qt == 0)
    def _():
        x_bf = x_ref[...].astype(jnp.bfloat16)                         # (C, N)
        # query in (C8, N): wq @ x  (canonical MXU matmul), bias over lanes.
        q = jnp.dot(wq_ref[...], x_bf,
                    preferred_element_type=jnp.float32) + bq_ref[...]
        q_s[...] = q.astype(jnp.bfloat16)
        # value in (C, N): wv @ x   (canonical MXU matmul).
        v = jnp.dot(wv_ref[...], x_bf,
                    preferred_element_type=jnp.float32) + bv_ref[...]
        v_s[...] = v.astype(jnp.bfloat16)
        # key stored transposed, (N, C8): contract x and wk^T over C.
        k = lax.dot_general(x_bf, wkT_ref[...], (((0,), (0,)), ((), ())),
                            preferred_element_type=jnp.float32) + bk_ref[...]
        k_s[...] = k.astype(jnp.bfloat16)

    # ---- Online (flash-style) softmax over key tiles for this query tile. ----
    q_start = pl.multiple_of(qt * tq, tq)
    q_tile = q_s[:, pl.ds(q_start, tq)]                                # (C8, TQ) bf16

    m_s[...] = jnp.full_like(m_s, -jnp.inf)
    l_s[...] = jnp.zeros_like(l_s)
    acc_s[...] = jnp.zeros_like(acc_s)

    @pl.loop(0, nk)
    def _(kt):
        k_off = pl.multiple_of(kt * tk, tk)
        k_tile = k_s[pl.ds(k_off, tk), :]                              # (TK, C8) bf16
        v_tile = v_s[:, pl.ds(k_off, tk)]                              # (C, TK)  bf16
        # sT[j, i] = energy[i, j]; softmax axis (keys) is axis 0.
        s = jnp.dot(k_tile, q_tile, preferred_element_type=jnp.float32)  # (TK, TQ) f32
        m_prev = m_s[...]                                              # (1, TQ)
        m_new = jnp.maximum(m_prev, jnp.max(s, axis=0, keepdims=True))
        alpha = jnp.exp(m_prev - m_new)                                # (1, TQ)
        p = jnp.exp(s - m_new)                                         # (TK, TQ)
        l_s[...] = alpha * l_s[...] + jnp.sum(p, axis=0, keepdims=True)
        acc_s[...] = alpha * acc_s[...] + jnp.dot(
            v_tile, p.astype(jnp.bfloat16), preferred_element_type=jnp.float32)
        m_s[...] = m_new

    # ---- Finalize: normalize, gamma-scale, fused residual, lane-dense store. ----
    inv_l = pl.reciprocal(l_s[...], approx=True)                       # (1, TQ)
    gamma = gamma_ref[0]                                               # SMEM scalar
    x_tile = x_ref[:, pl.ds(q_start, tq)]                              # (C, TQ) f32
    out_ref[...] = (gamma * (acc_s[...] * inv_l) + x_tile).astype(out_ref.dtype)


def _round_up(x, m):
    return (x + m - 1) // m * m


def _padded_bytes(shape, dtype):
    """Rough VMEM footprint of one buffer, including (sublane, lane) tiling pad."""
    itemsize = np.dtype(dtype).itemsize
    sub_tile = 8 * (4 // itemsize)        # 8 rows for f32, 16 for bf16
    rows = int(np.prod(shape[:-1])) if len(shape) > 1 else 1
    lanes = shape[-1]
    return _round_up(rows, sub_tile) * _round_up(lanes, 128) * itemsize


def _pick_tile(n, target=256):
    for t in (target, 256, 128):
        if n % t == 0:
            return min(t, n)
    return n  # fall back to full extent (still legal: block dim == array dim)


@functools.partial(jax.jit, static_argnames=("tq", "tk"))
def pam_forward(x_nchw, wq, bq, wk, bk, wv, bv, gamma, *, tq=None, tk=None):
    """PAM forward. x_nchw: (B, C, H, W) float32 -> (B, C, H, W) float32."""
    B, C, H, W = x_nchw.shape
    N = H * W
    C8 = wq.shape[0]
    tq = _pick_tile(N) if tq is None else tq
    tk = _pick_tile(N) if tk is None else tk
    assert N % tq == 0 and N % tk == 0, "spatial size must tile evenly"
    nq = N // tq

    x_flat = x_nchw.reshape(B, C, N).astype(jnp.float32)
    wq_bf = wq.astype(jnp.bfloat16)                     # (C8, C)
    wkT_bf = wk.T.astype(jnp.bfloat16)                  # (C, C8)
    wv_bf = wv.astype(jnp.bfloat16)                     # (C, C)
    bq2 = bq.reshape(C8, 1).astype(jnp.float32)
    bk2 = bk.reshape(1, C8).astype(jnp.float32)
    bv2 = bv.reshape(C, 1).astype(jnp.float32)
    gamma1 = gamma.reshape(1).astype(jnp.float32)

    # Explicit scoped-VMEM budget (resident x slab + Q/K/V scratch + blocks).
    budget = 2 * _padded_bytes((C, N), jnp.float32)         # x block (double-buffered)
    budget += 2 * _padded_bytes((C, tq), jnp.float32)       # out block
    budget += _padded_bytes((C8, N), jnp.bfloat16)          # Q scratch
    budget += _padded_bytes((N, C8), jnp.bfloat16)          # K^T scratch
    budget += _padded_bytes((C, N), jnp.bfloat16)           # V scratch
    budget += _padded_bytes((C, tq), jnp.float32)           # accumulator
    budget += 2 * _padded_bytes((1, tq), jnp.float32)       # running max / sum
    budget += 2 * (_padded_bytes((C8, C), jnp.bfloat16) +
                   _padded_bytes((C, C8), jnp.bfloat16) +
                   _padded_bytes((C, C), jnp.bfloat16) +
                   _padded_bytes((C8, 1), jnp.float32) +
                   _padded_bytes((1, C8), jnp.float32) +
                   _padded_bytes((C, 1), jnp.float32))
    # Clamp to 48 MiB so the limit is valid on v7x (64 MiB physical) as well.
    vmem_limit = int(min(max(int(budget * 1.5) + (4 << 20), 16 << 20), 48 << 20))

    kernel = functools.partial(_pam_kernel, tq=tq, tk=tk)

    out_flat = pl.pallas_call(
        kernel,
        out_shape=jax.ShapeDtypeStruct((B, C, N), jnp.float32),
        grid_spec=pltpu.PrefetchScalarGridSpec(
            num_scalar_prefetch=0,
            grid=(B, nq),
            in_specs=[
                pl.BlockSpec((None, C, N), lambda b, qi: (b, 0, 0)),   # x (per-batch slab)
                pl.BlockSpec((C8, C), lambda b, qi: (0, 0)),           # wq
                pl.BlockSpec((C8, 1), lambda b, qi: (0, 0)),           # bq
                pl.BlockSpec((C, C8), lambda b, qi: (0, 0)),           # wk^T
                pl.BlockSpec((1, C8), lambda b, qi: (0, 0)),           # bk
                pl.BlockSpec((C, C), lambda b, qi: (0, 0)),            # wv
                pl.BlockSpec((C, 1), lambda b, qi: (0, 0)),            # bv
                pl.BlockSpec(memory_space=pltpu.MemorySpace.SMEM),     # gamma scalar
            ],
            out_specs=pl.BlockSpec((None, C, tq), lambda b, qi: (b, 0, qi)),
            scratch_shapes=[
                pltpu.VMEM((C8, N), jnp.bfloat16),    # Q  in (C8, N)
                pltpu.VMEM((N, C8), jnp.bfloat16),    # K^T in (N, C8)
                pltpu.VMEM((C, N), jnp.bfloat16),     # V  in (C, N)
                pltpu.VMEM((1, tq), jnp.float32),     # running max
                pltpu.VMEM((1, tq), jnp.float32),     # running sum
                pltpu.VMEM((C, tq), jnp.float32),     # output accumulator
            ]),
        compiler_params=pltpu.CompilerParams(
            # Query-tile axis must stay sequential ("arbitrary"): Q/K/V scratch
            # is filled only at query-tile 0 of each batch element.  Batch axis
            # is "parallel" so megacore (v7x) still gets work for B >= 2.
            dimension_semantics=("parallel", "arbitrary"),
            vmem_limit_bytes=vmem_limit),
    )(x_flat, wq_bf, bq2, wkT_bf, bk2, wv_bf, bv2, gamma1)

    return out_flat.reshape(B, C, H, W)


def pam_reference(x_nchw, wq, bq, wk, bk, wv, bv, gamma):
    """Pure-JAX f32 reference mirroring the PyTorch forward."""
    B, C, H, W = x_nchw.shape
    N = H * W
    x = x_nchw.reshape(B, C, N)
    q = jnp.einsum("oc,bcn->bon", wq, x) + bq[None, :, None]    # (B, C8, N)
    k = jnp.einsum("oc,bcn->bon", wk, x) + bk[None, :, None]    # (B, C8, N)
    v = jnp.einsum("oc,bcn->bon", wv, x) + bv[None, :, None]    # (B, C,  N)
    energy = jnp.einsum("bci,bcj->bij", q, k)                   # (B, N, N)
    attn = jax.nn.softmax(energy, axis=-1)
    out = jnp.einsum("bcj,bij->bci", v, attn)                   # (B, C, N)
    out = out.reshape(B, C, H, W)
    return gamma.reshape(()) * out + x_nchw


if __name__ == "__main__":
    B, C, H, W = 2, 16, 16, 16          # in_dim = 16 -> query/key channels = 2
    C8 = C // 8

    key = jax.random.PRNGKey(0)
    k_x, k_wq, k_bq, k_wk, k_bk, k_wv, k_bv = jax.random.split(key, 7)

    x = jax.random.normal(k_x, (B, C, H, W), dtype=jnp.float32)

    bound = 1.0 / np.sqrt(C)
    wq = jax.random.uniform(k_wq, (C8, C), minval=-bound, maxval=bound, dtype=jnp.float32)
    bq = jax.random.uniform(k_bq, (C8,), minval=-bound, maxval=bound, dtype=jnp.float32)
    wk = jax.random.uniform(k_wk, (C8, C), minval=-bound, maxval=bound, dtype=jnp.float32)
    bk = jax.random.uniform(k_bk, (C8,), minval=-bound, maxval=bound, dtype=jnp.float32)
    wv = jax.random.uniform(k_wv, (C, C), minval=-bound, maxval=bound, dtype=jnp.float32)
    bv = jax.random.uniform(k_bv, (C,), minval=-bound, maxval=bound, dtype=jnp.float32)
    # PyTorch inits gamma to zeros(1); use a nonzero value so the attention
    # path is actually exercised (shape identical).
    gamma = jnp.array([0.5], dtype=jnp.float32)

    # tq=tk=128 on N=256 exercises multi-query-tile scratch reuse and the
    # multi-key-tile online-softmax path.
    out = pam_forward(x, wq, bq, wk, bk, wv, bv, gamma, tq=128, tk=128)
    out = jax.block_until_ready(out)

    ref = pam_reference(x, wq, bq, wk, bk, wv, bv, gamma)
    # Tolerance reflects bf16 MXU operands (f32 accumulation / softmax math).
    np.testing.assert_allclose(np.asarray(out), np.asarray(ref), rtol=1e-2, atol=1e-2)

    print("KERNEL_OK")
</pallas_src>

<mosaic_0001>
module attributes {stable_mosaic.version = 11 : i64} {
  func.func @_pam_kernel(%arg0: i32, %arg1: i32, %arg2: memref<1x16x256xf32, #tpu.memory_space<vmem>>, %arg3: memref<2x16xbf16, #tpu.memory_space<vmem>>, %arg4: memref<2x1xf32, #tpu.memory_space<vmem>>, %arg5: memref<16x2xbf16, #tpu.memory_space<vmem>>, %arg6: memref<1x2xf32, #tpu.memory_space<vmem>>, %arg7: memref<16x16xbf16, #tpu.memory_space<vmem>>, %arg8: memref<16x1xf32, #tpu.memory_space<vmem>>, %arg9: memref<1xf32, #tpu.memory_space<smem>>, %arg10: memref<1x16x128xf32, #tpu.memory_space<vmem>>, %arg11: memref<2x256xbf16, #tpu.memory_space<vmem>>, %arg12: memref<256x2xbf16, #tpu.memory_space<vmem>>, %arg13: memref<16x256xbf16, #tpu.memory_space<vmem>>, %arg14: memref<1x128xf32, #tpu.memory_space<vmem>>, %arg15: memref<1x128xf32, #tpu.memory_space<vmem>>, %arg16: memref<16x128xf32, #tpu.memory_space<vmem>>) attributes {dimension_semantics = [#tpu.dimension_semantics<parallel>, #tpu.dimension_semantics<arbitrary>], iteration_bounds = array<i64: 2, 2>, scalar_prefetch = 0 : i64, scratch_operands = 6 : i64, tpu.core_type = #tpu.core_type<tc>, window_params = [{transform_indices = @transform_0, window_bounds = array<i64: 1, 16, 256>}, {pipeline_mode = #tpu.pipeline_mode<synchronous>, transform_indices = @transform_1, window_bounds = array<i64: 2, 16>}, {pipeline_mode = #tpu.pipeline_mode<synchronous>, transform_indices = @transform_2, window_bounds = array<i64: 2, 1>}, {pipeline_mode = #tpu.pipeline_mode<synchronous>, transform_indices = @transform_3, window_bounds = array<i64: 16, 2>}, {pipeline_mode = #tpu.pipeline_mode<synchronous>, transform_indices = @transform_4, window_bounds = array<i64: 1, 2>}, {pipeline_mode = #tpu.pipeline_mode<synchronous>, transform_indices = @transform_5, window_bounds = array<i64: 16, 16>}, {pipeline_mode = #tpu.pipeline_mode<synchronous>, transform_indices = @transform_6, window_bounds = array<i64: 16, 1>}, {transform_indices = @transform_7, window_bounds = array<i64: 1>}, {transform_indices = @transform_8, window_bounds = array<i64: 1, 16, 128>}]} {
    %c0_i32 = arith.constant 0 : i32
    %0 = arith.cmpi eq, %arg1, %c0_i32 : i32
    %1 = arith.extui %0 : i1 to i32
    %c0_i32_0 = arith.constant 0 : i32
    %2 = arith.cmpi ne, %1, %c0_i32_0 : i32
    scf.if %2 {
      %c0_21 = arith.constant 0 : index
      %c0_22 = arith.constant 0 : index
      %c0_23 = arith.constant 0 : index
      %29 = vector.load %arg2[%c0_21, %c0_22, %c0_23] : memref<1x16x256xf32, #tpu.memory_space<vmem>>, vector<1x16x256xf32>
      %30 = vector.shape_cast %29 : vector<1x16x256xf32> to vector<16x256xf32>
      %31 = arith.truncf %30 : vector<16x256xf32> to vector<16x256xbf16>
      %c0_24 = arith.constant 0 : index
      %c0_25 = arith.constant 0 : index
      %32 = vector.load %arg3[%c0_24, %c0_25] : memref<2x16xbf16, #tpu.memory_space<vmem>>, vector<2x16xbf16>
      %cst_26 = arith.constant dense<0.000000e+00> : vector<2x256xf32>
      %33 = tpu.matmul %32, %31, %cst_26 {dimension_numbers = #tpu.dot_dimension_numbers<[1], [0], [0], [1], [0, 0, 1, 1], [], []>} : vector<2x16xbf16>, vector<16x256xbf16>, vector<2x256xf32> -> vector<2x256xf32>
      %c0_27 = arith.constant 0 : index
      %c0_28 = arith.constant 0 : index
      %34 = vector.load %arg4[%c0_27, %c0_28] : memref<2x1xf32, #tpu.memory_space<vmem>>, vector<2x1xf32>
      %35 = vector.broadcast %34 : vector<2x1xf32> to vector<2x256xf32>
      %36 = arith.addf %33, %35 : vector<2x256xf32>
      %37 = arith.truncf %36 : vector<2x256xf32> to vector<2x256xbf16>
      %c0_29 = arith.constant 0 : index
      %c0_30 = arith.constant 0 : index
      %38 = vector.load %arg11[%c0_29, %c0_30] : memref<2x256xbf16, #tpu.memory_space<vmem>>, vector<2x256xbf16>
      tpu.vector_store %arg11[%c0_29, %c0_30], %37 {strides = array<i32>} : memref<2x256xbf16, #tpu.memory_space<vmem>>, vector<2x256xbf16>,
      %c0_31 = arith.constant 0 : index
      %c0_32 = arith.constant 0 : index
      %39 = vector.load %arg7[%c0_31, %c0_32] : memref<16x16xbf16, #tpu.memory_space<vmem>>, vector<16x16xbf16>
      %cst_33 = arith.constant dense<0.000000e+00> : vector<16x256xf32>
      %40 = tpu.matmul %39, %31, %cst_33 {dimension_numbers = #tpu.dot_dimension_numbers<[1], [0], [0], [1], [0, 0, 1, 1], [], []>} : vector<16x16xbf16>, vector<16x256xbf16>, vector<16x256xf32> -> vector<16x256xf32>
      %c0_34 = arith.constant 0 : index
      %c0_35 = arith.constant 0 : index
      %41 = vector.load %arg8[%c0_34, %c0_35] : memref<16x1xf32, #tpu.memory_space<vmem>>, vector<16x1xf32>
      %42 = vector.broadcast %41 : vector<16x1xf32> to vector<16x256xf32>
      %43 = arith.addf %40, %42 : vector<16x256xf32>
      %44 = arith.truncf %43 : vector<16x256xf32> to vector<16x256xbf16>
      %c0_36 = arith.constant 0 : index
      %c0_37 = arith.constant 0 : index
      %45 = vector.load %arg13[%c0_36, %c0_37] : memref<16x256xbf16, #tpu.memory_space<vmem>>, vector<16x256xbf16>
      tpu.vector_store %arg13[%c0_36, %c0_37], %44 {strides = array<i32>} : memref<16x256xbf16, #tpu.memory_space<vmem>>, vector<16x256xbf16>,
      %c0_38 = arith.constant 0 : index
      %c0_39 = arith.constant 0 : index
      %46 = vector.load %arg5[%c0_38, %c0_39] : memref<16x2xbf16, #tpu.memory_space<vmem>>, vector<16x2xbf16>
      %cst_40 = arith.constant dense<0.000000e+00> : vector<256x2xf32>
      %47 = tpu.matmul %31, %46, %cst_40 {dimension_numbers = #tpu.dot_dimension_numbers<[0], [0], [1], [1], [0, 1, 1, 1], [], []>} : vector<16x256xbf16>, vector<16x2xbf16>, vector<256x2xf32> -> vector<256x2xf32>
      %c0_41 = arith.constant 0 : index
      %c0_42 = arith.constant 0 : index
      %48 = vector.load %arg6[%c0_41, %c0_42] : memref<1x2xf32, #tpu.memory_space<vmem>>, vector<1x2xf32>
      %49 = vector.broadcast %48 : vector<1x2xf32> to vector<256x2xf32>
      %50 = arith.addf %47, %49 : vector<256x2xf32>
      %51 = arith.truncf %50 : vector<256x2xf32> to vector<256x2xbf16>
      %c0_43 = arith.constant 0 : index
      %c0_44 = arith.constant 0 : index
      %52 = vector.load %arg12[%c0_43, %c0_44] : memref<256x2xbf16, #tpu.memory_space<vmem>>, vector<256x2xbf16>
      tpu.vector_store %arg12[%c0_43, %c0_44], %51 {strides = array<i32>} : memref<256x2xbf16, #tpu.memory_space<vmem>>, vector<256x2xbf16>,
    } else {
    }
    %c128_i32 = arith.constant 128 : i32
    %3 = arith.muli %arg1, %c128_i32 : i32
    %4 = tpu.assume_multiple %3, 128 : i32
    %c0 = arith.constant 0 : index
    %5 = arith.index_cast %4 : i32 to index
    %6 = vector.load %arg11[%c0, %5] : memref<2x256xbf16, #tpu.memory_space<vmem>>, vector<2x128xbf16>
    %cst = arith.constant 0xFF800000 : f32
    %7 = vector.broadcast %cst : f32 to vector<1x128xf32>
    %c0_1 = arith.constant 0 : index
    %c0_2 = arith.constant 0 : index
    %8 = vector.load %arg14[%c0_1, %c0_2] : memref<1x128xf32, #tpu.memory_space<vmem>>, vector<1x128xf32>
    tpu.vector_store %arg14[%c0_1, %c0_2], %7 {strides = array<i32>} : memref<1x128xf32, #tpu.memory_space<vmem>>, vector<1x128xf32>,
    %cst_3 = arith.constant 0.000000e+00 : f32
    %9 = vector.broadcast %cst_3 : f32 to vector<1x128xf32>
    %c0_4 = arith.constant 0 : index
    %c0_5 = arith.constant 0 : index
    %10 = vector.load %arg15[%c0_4, %c0_5] : memref<1x128xf32, #tpu.memory_space<vmem>>, vector<1x128xf32>
    tpu.vector_store %arg15[%c0_4, %c0_5], %9 {strides = array<i32>} : memref<1x128xf32, #tpu.memory_space<vmem>>, vector<1x128xf32>,
    %cst_6 = arith.constant 0.000000e+00 : f32
    %11 = vector.broadcast %cst_6 : f32 to vector<16x128xf32>
    %c0_7 = arith.constant 0 : index
    %c0_8 = arith.constant 0 : index
    %12 = vector.load %arg16[%c0_7, %c0_8] : memref<16x128xf32, #tpu.memory_space<vmem>>, vector<16x128xf32>
    tpu.vector_store %arg16[%c0_7, %c0_8], %11 {strides = array<i32>} : memref<16x128xf32, #tpu.memory_space<vmem>>, vector<16x128xf32>,
    %c0_i32_9 = arith.constant 0 : i32
    %c2_i32 = arith.constant 2 : i32
    %13 = arith.addi %c0_i32_9, %c2_i32 : i32
    %c1_i32 = arith.constant 1 : i32
    scf.for %arg17 = %c0_i32_9 to %13 step %c1_i32  : i32 {
      %c1_i32_21 = arith.constant 1 : i32
      %29 = arith.muli %arg17, %c1_i32_21 : i32
      %c0_i32_22 = arith.constant 0 : i32
      %30 = arith.addi %c0_i32_22, %29 : i32
      %c128_i32_23 = arith.constant 128 : i32
      %31 = arith.muli %30, %c128_i32_23 : i32
      %32 = tpu.assume_multiple %31, 128 : i32
      %33 = arith.index_cast %32 : i32 to index
      %c0_24 = arith.constant 0 : index
      %34 = vector.load %arg12[%33, %c0_24] : memref<256x2xbf16, #tpu.memory_space<vmem>>, vector<128x2xbf16>
      %c0_25 = arith.constant 0 : index
      %35 = arith.index_cast %32 : i32 to index
      %36 = vector.load %arg13[%c0_25, %35] : memref<16x256xbf16, #tpu.memory_space<vmem>>, vector<16x128xbf16>
      %cst_26 = arith.constant dense<0.000000e+00> : vector<128x128xf32>
      %37 = tpu.matmul %34, %6, %cst_26 {dimension_numbers = #tpu.dot_dimension_numbers<[1], [0], [0], [1], [0, 0, 1, 1], [], []>} : vector<128x2xbf16>, vector<2x128xbf16>, vector<128x128xf32> -> vector<128x128xf32>
      %c0_27 = arith.constant 0 : index
      %c0_28 = arith.constant 0 : index
      %38 = vector.load %arg14[%c0_27, %c0_28] : memref<1x128xf32, #tpu.memory_space<vmem>>, vector<1x128xf32>
      %cst_29 = arith.constant dense<0xFF800000> : vector<128xf32>
      %39 = vector.multi_reduction <maximumf>, %37, %cst_29 [0] : vector<128x128xf32> to vector<128xf32>
      %40 = vector.shape_cast %39 : vector<128xf32> to vector<1x128xf32>
      %41 = arith.maximumf %38, %40 : vector<1x128xf32>
      %42 = arith.subf %38, %41 : vector<1x128xf32>
      %43 = math.exp %42 : vector<1x128xf32>
      %44 = vector.broadcast %41 : vector<1x128xf32> to vector<128x128xf32>
      %45 = arith.subf %37, %44 : vector<128x128xf32>
      %46 = math.exp %45 : vector<128x128xf32>
      %c0_30 = arith.constant 0 : index
      %c0_31 = arith.constant 0 : index
      %47 = vector.load %arg15[%c0_30, %c0_31] : memref<1x128xf32, #tpu.memory_space<vmem>>, vector<1x128xf32>
      %48 = arith.mulf %43, %47 : vector<1x128xf32>
      %cst_32 = arith.constant dense<0.000000e+00> : vector<128xf32>
      %49 = vector.multi_reduction <add>, %46, %cst_32 [0] : vector<128x128xf32> to vector<128xf32>
      %50 = vector.shape_cast %49 : vector<128xf32> to vector<1x128xf32>
      %51 = arith.addf %48, %50 : vector<1x128xf32>
      %c0_33 = arith.constant 0 : index
      %c0_34 = arith.constant 0 : index
      %52 = vector.load %arg15[%c0_33, %c0_34] : memref<1x128xf32, #tpu.memory_space<vmem>>, vector<1x128xf32>
      tpu.vector_store %arg15[%c0_33, %c0_34], %51 {strides = array<i32>} : memref<1x128xf32, #tpu.memory_space<vmem>>, vector<1x128xf32>,
      %c0_35 = arith.constant 0 : index
      %c0_36 = arith.constant 0 : index
      %53 = vector.load %arg16[%c0_35, %c0_36] : memref<16x128xf32, #tpu.memory_space<vmem>>, vector<16x128xf32>
      %54 = vector.broadcast %43 : vector<1x128xf32> to vector<16x128xf32>
      %55 = arith.mulf %54, %53 : vector<16x128xf32>
      %56 = arith.truncf %46 : vector<128x128xf32> to vector<128x128xbf16>
      %cst_37 = arith.constant dense<0.000000e+00> : vector<16x128xf32>
      %57 = tpu.matmul %36, %56, %cst_37 {dimension_numbers = #tpu.dot_dimension_numbers<[1], [0], [0], [1], [0, 0, 1, 1], [], []>} : vector<16x128xbf16>, vector<128x128xbf16>, vector<16x128xf32> -> vector<16x128xf32>
      %58 = arith.addf %55, %57 : vector<16x128xf32>
      %c0_38 = arith.constant 0 : index
      %c0_39 = arith.constant 0 : index
      %59 = vector.load %arg16[%c0_38, %c0_39] : memref<16x128xf32, #tpu.memory_space<vmem>>, vector<16x128xf32>
      tpu.vector_store %arg16[%c0_38, %c0_39], %58 {strides = array<i32>} : memref<16x128xf32, #tpu.memory_space<vmem>>, vector<16x128xf32>,
      %c0_40 = arith.constant 0 : index
      %c0_41 = arith.constant 0 : index
      %60 = vector.load %arg14[%c0_40, %c0_41] : memref<1x128xf32, #tpu.memory_space<vmem>>, vector<1x128xf32>
      tpu.vector_store %arg14[%c0_40, %c0_41], %41 {strides = array<i32>} : memref<1x128xf32, #tpu.memory_space<vmem>>, vector<1x128xf32>,
    }
    %c2_i32_10 = arith.constant 2 : i32
    %c0_11 = arith.constant 0 : index
    %c0_12 = arith.constant 0 : index
    %14 = vector.load %arg15[%c0_11, %c0_12] : memref<1x128xf32, #tpu.memory_space<vmem>>, vector<1x128xf32>
    %15 = tpu.reciprocal %14 {approx = true} : vector<1x128xf32> -> vector<1x128xf32>
    %c0_13 = arith.constant 0 : index
    %16 = memref.load %arg9[%c0_13] : memref<1xf32, #tpu.memory_space<smem>>
    %c0_14 = arith.constant 0 : index
    %c0_15 = arith.constant 0 : index
    %17 = arith.index_cast %4 : i32 to index
    %18 = vector.load %arg2[%c0_14, %c0_15, %17] : memref<1x16x256xf32, #tpu.memory_space<vmem>>, vector<1x16x128xf32>
    %19 = vector.shape_cast %18 : vector<1x16x128xf32> to vector<16x128xf32>
    %c0_16 = arith.constant 0 : index
    %c0_17 = arith.constant 0 : index
    %20 = vector.load %arg16[%c0_16, %c0_17] : memref<16x128xf32, #tpu.memory_space<vmem>>, vector<16x128xf32>
    %21 = vector.broadcast %15 : vector<1x128xf32> to vector<16x128xf32>
    %22 = arith.mulf %20, %21 : vector<16x128xf32>
    %23 = vector.broadcast %16 : f32 to vector<16x128xf32>
    %24 = arith.mulf %23, %22 : vector<16x128xf32>
    %25 = arith.addf %24, %19 : vector<16x128xf32>
    %c0_18 = arith.constant 0 : index
    %c0_19 = arith.constant 0 : index
    %c0_20 = arith.constant 0 : index
    %26 = vector.load %arg10[%c0_18, %c0_19, %c0_20] : memref<1x16x128xf32, #tpu.memory_space<vmem>>, vector<1x16x128xf32>
    %27 = vector.shape_cast %26 : vector<1x16x128xf32> to vector<16x128xf32>
    %28 = vector.shape_cast %25 : vector<16x128xf32> to vector<1x16x128xf32>
    tpu.vector_store %arg10[%c0_18, %c0_19, %c0_20], %28 {strides = array<i32>} : memref<1x16x128xf32, #tpu.memory_space<vmem>>, vector<1x16x128xf32>,
    return
  }
  func.func @transform_0(%arg0: i32, %arg1: i32) -> (i32, i32, i32) {
    %c0_i32 = arith.constant 0 : i32
    %c0_i32_0 = arith.constant 0 : i32
    %c0_i32_1 = arith.constant 0 : i32
    return %arg0, %c0_i32, %c0_i32_0 : i32, i32, i32
  }
  func.func @transform_1(%arg0: i32, %arg1: i32) -> (i32, i32) {
    %c0_i32 = arith.constant 0 : i32
    %c0_i32_0 = arith.constant 0 : i32
    %c0_i32_1 = arith.constant 0 : i32
    return %c0_i32, %c0_i32_0 : i32, i32
  }
  func.func @transform_2(%arg0: i32, %arg1: i32) -> (i32, i32) {
    %c0_i32 = arith.constant 0 : i32
    %c0_i32_0 = arith.constant 0 : i32
    %c0_i32_1 = arith.constant 0 : i32
    return %c0_i32, %c0_i32_0 : i32, i32
  }
  func.func @transform_3(%arg0: i32, %arg1: i32) -> (i32, i32) {
    %c0_i32 = arith.constant 0 : i32
    %c0_i32_0 = arith.constant 0 : i32
    %c0_i32_1 = arith.constant 0 : i32
    return %c0_i32, %c0_i32_0 : i32, i32
  }
  func.func @transform_4(%arg0: i32, %arg1: i32) -> (i32, i32) {
    %c0_i32 = arith.constant 0 : i32
    %c0_i32_0 = arith.constant 0 : i32
    %c0_i32_1 = arith.constant 0 : i32
    return %c0_i32, %c0_i32_0 : i32, i32
  }
  func.func @transform_5(%arg0: i32, %arg1: i32) -> (i32, i32) {
    %c0_i32 = arith.constant 0 : i32
    %c0_i32_0 = arith.constant 0 : i32
    %c0_i32_1 = arith.constant 0 : i32
    return %c0_i32, %c0_i32_0 : i32, i32
  }
  func.func @transform_6(%arg0: i32, %arg1: i32) -> (i32, i32) {
    %c0_i32 = arith.constant 0 : i32
    %c0_i32_0 = arith.constant 0 : i32
    %c0_i32_1 = arith.constant 0 : i32
    return %c0_i32, %c0_i32_0 : i32, i32
  }
  func.func @transform_7(%arg0: i32, %arg1: i32) -> i32 {
    %c0_i32 = arith.constant 0 : i32
    %c0_i32_0 = arith.constant 0 : i32
    return %c0_i32 : i32
  }
  func.func @transform_8(%arg0: i32, %arg1: i32) -> (i32, i32, i32) {
    %c0_i32 = arith.constant 0 : i32
    %c0_i32_0 = arith.constant 0 : i32
    return %arg0, %c0_i32, %arg1 : i32, i32, i32
  }
}

</mosaic_0001>

<llo_original>
// kernel: pam_forward.1
$region0: #{pam_forward.1}
  #allocation0 [shape = 'u32[]', space=smem, size = 0x4, offset = 0x4, fixed_abs, tag = 'smem constant byte address 0x4 - core index']
  #allocation1 [shape = 'u32[144,128]{1,0:T(1,128)}', space=vmem, size = 0x12000, scoped, tag = 'internal scratch']
  #allocation2 [shape = 'bf16[2,256]{1,0:T(2,128)(2,1)}', space=vmem, size = 0x400, scoped, tag = 'scratch operand']
  #allocation3 [shape = 'bf16[256,2]{1,0:T(8,128)(2,1)}', space=vmem, size = 0x10000, scoped, tag = 'scratch operand']
  #allocation4 [shape = 'bf16[16,256]{1,0:T(8,128)(2,1)}', space=vmem, size = 0x2000, scoped, tag = 'scratch operand']
  #allocation5 [shape = 'f32[1,128]{1,0:T(1,128)}', space=vmem, size = 0x200, scoped, tag = 'scratch operand']
  #allocation6 [shape = 'f32[1,128]{1,0:T(1,128)}', space=vmem, size = 0x200, scoped, tag = 'scratch operand']
  #allocation7 [shape = 'f32[16,128]{1,0:T(8,128)}', space=vmem, size = 0x2000, scoped, tag = 'scratch operand']
  #allocation8 [shape = 'f32[1]{0:T(128)S(6)}', space=smem, size = 0x200, scoped, tag = 'scoped memory for pam_forward.1']
  %s0 = inlined_call_operand.vmem [shape: f32[2,16,256], index: 0, kind: input, shape index: {}]
  %s1 = inlined_call_operand.vmem [shape: bf16[2,16], index: 1, kind: input, shape index: {}]
  %s2 = inlined_call_operand.vmem [shape: f32[2,1], index: 2, kind: input, shape index: {}]
  %s3 = inlined_call_operand.vmem [shape: bf16[16,2], index: 3, kind: input, shape index: {}]
  %s4 = inlined_call_operand.vmem [shape: f32[1,2], index: 4, kind: input, shape index: {}]
  %s5 = inlined_call_operand.vmem [shape: bf16[16,16], index: 5, kind: input, shape index: {}]
  %s6 = inlined_call_operand.vmem [shape: f32[16,1], index: 6, kind: input, shape index: {}]
  %s7 = inlined_call_operand.<no memory space> [shape: f32[1], index: 7, kind: input, shape index: {}]
  %s8 = inlined_call_operand.vmem [shape: f32[2,16,256], index: 8, kind: output, shape index: {}]
  %s9 = sld [smem:[#allocation0]]
  $region110: #{pam_forward.1} parent=0
    _
  %s11 = ssub.s32 1, %s9
  %s12 = scalar_select 0, %s11, %s9
  %13 = sst [smem:[#allocation8]] %s7
  $region1: #{pam_forward.1} parent=0
    #allocation9 [shape = 'u8[16384]{0}', space=vmem, size = 0x4000, scoped, tag = 'output window, operand 0']
    loop: start=0, step=1, limit=6
    $region2: #{pam_forward.1} parent=1 // loop_pre_header
      _
    $region3: #{pam_forward.1} parent=1 // loop_header
      %s15 = sphi 0, %s19
      %p16 = scmp.ge.s32.totalorder %s15, 6
      %s22 = sphi 0, %s34
      %s23 = sphi 0, %s30
      %s24 = sphi 0, %s22
      %s25 = sphi 0, %s23
      %s26 = sphi 0, %s24
      %s27 = sphi 0, %s25
      %s37 = sphi 0, %s39
      %s40 = sphi 0, %s37
      %s41 = sphi 0, %s40
      %s57 = sphi 0, %s41
      %s61 = sphi 0, %s61
      %s63 = sphi 0, %s61
      %s64 = sphi 0, %s63
      %s78 = sphi 0, %s64
      %s82 = sphi 0, %s82
      %s84 = sphi 0, %s82
      %s85 = sphi 0, %s84
      %s99 = sphi 0, %s85
      %s103 = sphi 0, %s103
      %s105 = sphi 0, %s103
      %s106 = sphi 0, %s105
      %s120 = sphi 0, %s106
      %s124 = sphi 0, %s124
      %s126 = sphi 0, %s124
      %s127 = sphi 0, %s126
      %s141 = sphi 0, %s127
      %s145 = sphi 0, %s145
      %s147 = sphi 0, %s145
      %s148 = sphi 0, %s147
      %s162 = sphi 0, %s148
      %s166 = sphi 0, %s166
      %s168 = sphi 0, %s166
      %s169 = sphi 0, %s168
      %s183 = sphi 0, %s169
      %s187 = sphi 0, %s187
      %s189 = sphi 0, %s187
      %s190 = sphi 0, %s189
      %s204 = sphi 0, %s190
      %s212 = sphi 0, %s214
      %s215 = sphi 0, %s212
      %s216 = sphi 0, %s215
      %s232 = sphi 0, %s216
    $region4: #{pam_forward.1} parent=1 // loop_header_branch
      %18 = sbr.rel (%p16) target = $region8
    $region5: #{pam_forward.1} parent=1 // loop_body
      %s20 = ssub.s32 %s15, 1
      %s21 = ssub.s32 %s15, 2
      %s28 = sadd.s32 1, %s23
      %p29 = scmp.ge.s32.totalorder %s28, 2
      %s30 = scalar_select %p29, 0, %s28
      %s31 = sadd.s32 1, %s22
      %s32 = scalar_select %p29, %s31, %s22
      %p33 = scmp.ge.s32.totalorder %s32, 2
      %s34 = scalar_select %p33, 0, %s32
      %s35 = ssub.s32 %s22, %s34
      %p36 = scmp.eq.s32.totalorder %s35, 0
      %s38 = sadd.s32 %s37, 1
      %s39 = scalar_select %p36, %s37, %s38
      %p42 = pneg %p36
      %p43 = scmp.eq.s32.totalorder %s15, 3
      %p44 = por %p42, %p43
      %p45 = scmp.ne.s32.totalorder %s37, %s40
      %p46 = scmp.eq.s32.totalorder %s15, 0
      %p47 = por %p45, %p46
      %p48 = scmp.ne.s32.totalorder %s37, %s40
      %p49 = scmp.eq.s32.totalorder %s20, 3
      %p50 = por %p48, %p49
      %p51 = scmp.ne.s32.totalorder %s40, %s41
      %p52 = scmp.eq.s32.totalorder %s20, 0
      %p53 = por %p51, %p52
      %p54 = scmp.ne.s32.totalorder %s40, %s41
      %p55 = scmp.eq.s32.totalorder %s21, 3
      %p56 = por %p54, %p55
      %p58 = scmp.ne.s32.totalorder %s41, %s57
      %p59 = scmp.eq.s32.totalorder %s21, 0
      %p60 = por %p58, %p59
      %s62 = sadd.s32 %s61, 1
      %p65 = scmp.eq.s32.totalorder %s15, 3
      %p66 = scmp.ne.s32.totalorder %s61, %s63
      %p67 = scmp.eq.s32.totalorder %s15, 0
      %p68 = por %p66, %p67
      %p69 = scmp.ne.s32.totalorder %s61, %s63
      %p70 = scmp.eq.s32.totalorder %s20, 3
      %p71 = por %p69, %p70
      %p72 = scmp.ne.s32.totalorder %s63, %s64
      %p73 = scmp.eq.s32.totalorder %s20, 0
      %p74 = por %p72, %p73
      %p75 = scmp.ne.s32.totalorder %s63, %s64
      %p76 = scmp.eq.s32.totalorder %s21, 3
      %p77 = por %p75, %p76
      %p79 = scmp.ne.s32.totalorder %s64, %s78
      %p80 = scmp.eq.s32.totalorder %s21, 0
      %p81 = por %p79, %p80
      %s83 = sadd.s32 %s82, 1
      %p86 = scmp.eq.s32.totalorder %s15, 3
      %p87 = scmp.ne.s32.totalorder %s82, %s84
      %p88 = scmp.eq.s32.totalorder %s15, 0
      %p89 = por %p87, %p88
      %p90 = scmp.ne.s32.totalorder %s82, %s84
      %p91 = scmp.eq.s32.totalorder %s20, 3
      %p92 = por %p90, %p91
      %p93 = scmp.ne.s32.totalorder %s84, %s85
      %p94 = scmp.eq.s32.totalorder %s20, 0
      %p95 = por %p93, %p94
      %p96 = scmp.ne.s32.totalorder %s84, %s85
      %p97 = scmp.eq.s32.totalorder %s21, 3
      %p98 = por %p96, %p97
      %p100 = scmp.ne.s32.totalorder %s85, %s99
      %p101 = scmp.eq.s32.totalorder %s21, 0
      %p102 = por %p100, %p101
      %s104 = sadd.s32 %s103, 1
      %p107 = scmp.eq.s32.totalorder %s15, 3
      %p108 = scmp.ne.s32.totalorder %s103, %s105
      %p109 = scmp.eq.s32.totalorder %s15, 0
      %p110 = por %p108, %p109
      %p111 = scmp.ne.s32.totalorder %s103, %s105
      %p112 = scmp.eq.s32.totalorder %s20, 3
      %p113 = por %p111, %p112
      %p114 = scmp.ne.s32.totalorder %s105, %s106
      %p115 = scmp.eq.s32.totalorder %s20, 0
      %p116 = por %p114, %p115
      %p117 = scmp.ne.s32.totalorder %s105, %s106
      %p118 = scmp.eq.s32.totalorder %s21, 3
      %p119 = por %p117, %p118
      %p121 = scmp.ne.s32.totalorder %s106, %s120
      %p122 = scmp.eq.s32.totalorder %s21, 0
      %p123 = por %p121, %p122
      %s125 = sadd.s32 %s124, 1
      %p128 = scmp.eq.s32.totalorder %s15, 3
      %p129 = scmp.ne.s32.totalorder %s124, %s126
      %p130 = scmp.eq.s32.totalorder %s15, 0
      %p131 = por %p129, %p130
      %p132 = scmp.ne.s32.totalorder %s124, %s126
      %p133 = scmp.eq.s32.totalorder %s20, 3
      %p134 = por %p132, %p133
      %p135 = scmp.ne.s32.totalorder %s126, %s127
      %p136 = scmp.eq.s32.totalorder %s20, 0
      %p137 = por %p135, %p136
      %p138 = scmp.ne.s32.totalorder %s126, %s127
      %p139 = scmp.eq.s32.totalorder %s21, 3
      %p140 = por %p138, %p139
      %p142 = scmp.ne.s32.totalorder %s127, %s141
      %p143 = scmp.eq.s32.totalorder %s21, 0
      %p144 = por %p142, %p143
      %s146 = sadd.s32 %s145, 1
      %p149 = scmp.eq.s32.totalorder %s15, 3
      %p150 = scmp.ne.s32.totalorder %s145, %s147
      %p151 = scmp.eq.s32.totalorder %s15, 0
      %p152 = por %p150, %p151
      %p153 = scmp.ne.s32.totalorder %s145, %s147
      %p154 = scmp.eq.s32.totalorder %s20, 3
      %p155 = por %p153, %p154
      %p156 = scmp.ne.s32.totalorder %s147, %s148
      %p157 = scmp.eq.s32.totalorder %s20, 0
      %p158 = por %p156, %p157
      %p159 = scmp.ne.s32.totalorder %s147, %s148
      %p160 = scmp.eq.s32.totalorder %s21, 3
      %p161 = por %p159, %p160
      %p163 = scmp.ne.s32.totalorder %s148, %s162
      %p164 = scmp.eq.s32.totalorder %s21, 0
      %p165 = por %p163, %p164
      %s167 = sadd.s32 %s166, 1
      %p170 = scmp.eq.s32.totalorder %s15, 3
      %p171 = scmp.ne.s32.totalorder %s166, %s168
      %p172 = scmp.eq.s32.totalorder %s15, 0
      %p173 = por %p171, %p172
      %p174 = scmp.ne.s32.totalorder %s166, %s168
      %p175 = scmp.eq.s32.totalorder %s20, 3
      %p176 = por %p174, %p175
      %p177 = scmp.ne.s32.totalorder %s168, %s169
      %p178 = scmp.eq.s32.totalorder %s20, 0
      %p179 = por %p177, %p178
      %p180 = scmp.ne.s32.totalorder %s168, %s169
      %p181 = scmp.eq.s32.totalorder %s21, 3
      %p182 = por %p180, %p181
      %p184 = scmp.ne.s32.totalorder %s169, %s183
      %p185 = scmp.eq.s32.totalorder %s21, 0
      %p186 = por %p184, %p185
      %s188 = sadd.s32 %s187, 1
      %p191 = scmp.eq.s32.totalorder %s15, 3
      %p192 = scmp.ne.s32.totalorder %s187, %s189
      %p193 = scmp.eq.s32.totalorder %s15, 0
      %p194 = por %p192, %p193
      %p195 = scmp.ne.s32.totalorder %s187, %s189
      %p196 = scmp.eq.s32.totalorder %s20, 3
      %p197 = por %p195, %p196
      %p198 = scmp.ne.s32.totalorder %s189, %s190
      %p199 = scmp.eq.s32.totalorder %s20, 0
      %p200 = por %p198, %p199
      %p201 = scmp.ne.s32.totalorder %s189, %s190
      %p202 = scmp.eq.s32.totalorder %s21, 3
      %p203 = por %p201, %p202
      %p205 = scmp.ne.s32.totalorder %s190, %s204
      %p206 = scmp.eq.s32.totalorder %s21, 0
      %p207 = por %p205, %p206
      %s208 = ssub.s32 %s22, %s34
      %s209 = ssub.s32 %s23, %s30
      %s210 = sor.u32 %s208, %s209
      %p211 = scmp.eq.s32.totalorder %s210, 0
      %s213 = sadd.s32 %s212, 1
      %s214 = scalar_select %p211, %s212, %s213
      %p217 = pneg %p211
      %p218 = scmp.eq.s32.totalorder %s15, 3
      %p219 = por %p217, %p218
      %p220 = scmp.ne.s32.totalorder %s212, %s215
      %p221 = scmp.eq.s32.totalorder %s15, 0
      %p222 = por %p220, %p221
      %p223 = scmp.ne.s32.totalorder %s212, %s215
      %p224 = scmp.eq.s32.totalorder %s20, 3
      %p225 = por %p223, %p224
      %p226 = scmp.ne.s32.totalorder %s215, %s216
      %p227 = scmp.eq.s32.totalorder %s20, 0
      %p228 = por %p226, %p227
      %p229 = scmp.ne.s32.totalorder %s215, %s216
      %p230 = scmp.eq.s32.totalorder %s21, 3
      %p231 = por %p229, %p230
      %p233 = scmp.ne.s32.totalorder %s216, %s232
      %p234 = scmp.eq.s32.totalorder %s21, 0
      %p235 = por %p233, %p234
      %p236 = scmp.le.s32.totalorder 1, %s15
      %p237 = scmp.lt.s32.totalorder %s15, 5
      %p238 = pnand %p236, %p237
      %p239 = pneg %p238
      // Predicated region
      $region9: #{pam_forward.1} parent=5 // pred_check
        _
      $region10: #{pam_forward.1} parent=5 // pred_check_branch
        %241 = sbr.rel (%p238) target = $region12
      $region11: #{pam_forward.1} parent=5 // pred_region
        %s242 = ssub.s32 %s15, 1
        // Predicated region
        $region13: #{pam_forward.1} parent=11 // pred_check
          %p243 = pneg %p74
        $region14: #{pam_forward.1} parent=11 // pred_check_branch
          %245 = sbr.rel (%p243) target = $region16
        $region15: #{pam_forward.1} parent=11 // pred_region
          _
        $region16: #{pam_forward.1} parent=11 // pred_fallthru
          _
        // Predicated region
        $region17: #{pam_forward.1} parent=11 // pred_check
          %p246 = pneg %p95
        $region18: #{pam_forward.1} parent=11 // pred_check_branch
          %248 = sbr.rel (%p246) target = $region20
        $region19: #{pam_forward.1} parent=11 // pred_region
          _
        $region20: #{pam_forward.1} parent=11 // pred_fallthru
          _
        // Predicated region
        $region21: #{pam_forward.1} parent=11 // pred_check
          %p249 = pneg %p116
        $region22: #{pam_forward.1} parent=11 // pred_check_branch
          %251 = sbr.rel (%p249) target = $region24
        $region23: #{pam_forward.1} parent=11 // pred_region
          _
        $region24: #{pam_forward.1} parent=11 // pred_fallthru
          _
        // Predicated region
        $region25: #{pam_forward.1} parent=11 // pred_check
          %p252 = pneg %p137
        $region26: #{pam_forward.1} parent=11 // pred_check_branch
          %254 = sbr.rel (%p252) target = $region28
        $region27: #{pam_forward.1} parent=11 // pred_region
          _
        $region28: #{pam_forward.1} parent=11 // pred_fallthru
          _
        // Predicated region
        $region29: #{pam_forward.1} parent=11 // pred_check
          %p255 = pneg %p158
        $region30: #{pam_forward.1} parent=11 // pred_check_branch
          %257 = sbr.rel (%p255) target = $region32
        $region31: #{pam_forward.1} parent=11 // pred_region
          _
        $region32: #{pam_forward.1} parent=11 // pred_fallthru
          _
        // Predicated region
        $region33: #{pam_forward.1} parent=11 // pred_check
          %p258 = pneg %p179
        $region34: #{pam_forward.1} parent=11 // pred_check_branch
          %260 = sbr.rel (%p258) target = $region36
        $region35: #{pam_forward.1} parent=11 // pred_region
          _
        $region36: #{pam_forward.1} parent=11 // pred_fallthru
          _
        // Predicated region
        $region37: #{pam_forward.1} parent=11 // pred_check
          %p261 = pneg %p200
        $region38: #{pam_forward.1} parent=11 // pred_check_branch
          %263 = sbr.rel (%p261) target = $region40
        $region39: #{pam_forward.1} parent=11 // pred_region
          _
        $region40: #{pam_forward.1} parent=11 // pred_fallthru
          _
      $region12: #{pam_forward.1} parent=5 // pred_fallthru
        _
      %p264 = scmp.lt.s32.totalorder %s15, 4
      // Predicated region
      $region41: #{pam_forward.1} parent=5 // pred_check
        %p265 = pneg %p264
      $region42: #{pam_forward.1} parent=5 // pred_check_branch
        %267 = sbr.rel (%p265) target = $region44
      $region43: #{pam_forward.1} parent=5 // pred_region
        // Predicated region
        $region45: #{pam_forward.1} parent=43 // pred_check
          %p268 = pneg %p47
        $region46: #{pam_forward.1} parent=43 // pred_check_branch
          %270 = sbr.rel (%p268) target = $region48
        $region47: #{pam_forward.1} parent=43 // pred_region
          %p271 = scmp.lt.s32.totalorder %s22, 1
          %s272 = scalar_select %p271, %s22, 1
          %s273 = smul.addr %s272, 4
          %s274 = smul.addr %s273, 8
          %s275 = scalar_lea.vmem %s0, %s274
        $region48: #{pam_forward.1} parent=43 // pred_fallthru
          _
      $region44: #{pam_forward.1} parent=5 // pred_fallthru
        _
      %p276 = scmp.le.s32.totalorder 1, %s15
      %p277 = scmp.lt.s32.totalorder %s15, 5
      %p278 = pnand %p276, %p277
      %p279 = pneg %p278
      // Predicated region
      $region49: #{pam_forward.1} parent=5 // pred_check
        _
      $region50: #{pam_forward.1} parent=5 // pred_check_branch
        %281 = sbr.rel (%p278) target = $region52
      $region51: #{pam_forward.1} parent=5 // pred_region
        %s282 = ssub.s32 %s15, 1
        %p283 = scmp.lt.s32.totalorder %s24, 1
        %s284 = scalar_select %p283, %s24, 1
        %s285 = smul.addr %s284, 4
        %s286 = smul.addr %s285, 8
        %s287 = scalar_lea.vmem %s0, %s286
        %p288 = pneg %p53
        %p289 = pneg %p50
        %p290 = pneg %p74
        %p291 = pneg %p71
        %p292 = pneg %p95
        %p293 = pneg %p92
        %p294 = pneg %p116
        %p295 = pneg %p113
        %p296 = pneg %p137
        %p297 = pneg %p134
        %p298 = pneg %p158
        %p299 = pneg %p155
        %p300 = pneg %p179
        %p301 = pneg %p176
        %p302 = pneg %p200
        %p303 = pneg %p197
        %p304 = pneg %p228
        %p305 = pneg %p225
        %s306 = sand.u32 %s215, 1
        %s307 = sand.u32 %s215, 1
        %s308 = smul.addr %s307, 16
        %s309 = scalar_lea.vmem [#allocation9], %s308
        %p310 = scmp.lt.s32.totalorder %s24, 1
        %s311 = scalar_select %p310, %s24, 1
        %s312 = smul.addr %s311, 4
        %s313 = smul.addr %s312, 8
        %s314 = scalar_lea.vmem %s0, %s313
        %p316 = scmp.eq.s32.totalorder %s25, 0
        // Predicated region
        $region53: #{pam_forward.1} parent=51 // pred_check
          %p317 = pneg %p316
        $region54: #{pam_forward.1} parent=51 // pred_check_branch
          %319 = sbr.rel (%p317) target = $region56
        $region55: #{pam_forward.1} parent=51 // pred_region
          %v320 = vld [vmem:[%s314] sm:$0xff]
          %v321 = vld [vmem:[%s314 + $0x8] sm:$0xff]
          %v322 = vld [vmem:[%s314 + $0x10] sm:$0xff]
          %v323 = vld [vmem:[%s314 + $0x18] sm:$0xff]
          %v324 = vpack.c.bf16 %v322, %v320
          %v325 = vpack.c.bf16 %v323, %v321
          %v326 = vld [vmem:[%s1] sm:$0x1]
          %v327 = vld [vmem:[%s2] sm:$0x3]
          %329 = vset.pattern.permute.xlu0 0
          %330 = vperm.xlu0 %329, %v327
          %v331 = vpop.permute.xlu0 %330
          %vm333 = vcmask 130048
          %v335 = vsel %vm333, %v326, 0
          %337 = vmatprep.subr.bf16.mxu0 0
          %338 = vmatpush1.bf16.msra.mxu0 0
          %339 = vmatprep.subr.bf16.mxu0 0
          %340 = vmatpush1.bf16.msra.mxu0 0
          %341 = vmatprep.subr.bf16.mxu0 0
          %342 = vmatpush1.bf16.msra.mxu0 0
          %343 = vmatprep.subr.bf16.mxu0 0
          %344 = vmatpush1.bf16.msra.mxu0 0
          %345 = vmatprep.subr.bf16.mxu0 0
          %346 = vmatpush1.bf16.msra.mxu0 0
          %347 = vmatprep.subr.bf16.mxu0 0
          %348 = vmatpush1.bf16.msra.mxu0 0
          %349 = vmatprep.subr.bf16.mxu0 0
          %350 = vmatpush1.bf16.msra.mxu0 0
          %351 = vmatprep.subr.bf16.mxu0 %v325
          %352 = vmatpush1.bf16.msra.mxu0 %v324
          %353 = vmatprep.subr.bf16.mxu0 0
          %354 = vmatpush2.bf16.msra.mxu0 0
          %355 = vmatprep.subr.bf16.mxu0 0
          %356 = vmatpush2.bf16.msra.mxu0 0
          %357 = vmatprep.subr.bf16.mxu0 0
          %358 = vmatpush2.bf16.msra.mxu0 0
          %359 = vmatprep.subr.bf16.mxu0 0
          %360 = vmatpush2.bf16.msra.mxu0 0
          %361 = vmatprep.subr.bf16.mxu0 0
          %362 = vmatpush2.bf16.msra.mxu0 0
          %363 = vmatprep.subr.bf16.mxu0 0
          %364 = vmatpush2.bf16.msra.mxu0 0
          %365 = vmatprep.subr.bf16.mxu0 0
          %366 = vmatpush2.bf16.msra.mxu0 0
          %367 = vmatprep.subr.bf16.mxu0 0
          %368 = vmatpush2.bf16.msra.mxu0 0
          %369 = vmatprep.mubr.bf16.mxu0 0
          %370 = vmatmul.mubr.bf16.gmra.mxu0 %v335
          %v371 = vpop.f32.mrf.mxu0
          %v372 = vadd.f32 %v331, %v371
          %v373 = vpop.f32.mrf.mxu0
          %v374 = vadd.f32 %v331, %v373
          %v375 = vpop.f32.mrf.mxu0
          %v376 = vpop.f32.mrf.mxu0
          %377 = vdwg.mxu0
          %v378 = vpack.c.bf16 %v372, %v372
          %v379 = vpack.c.bf16 %v374, %v374
          %v382 = vcombine.low %v378, %v379
          %v384 = vunpack.c.l.s4 1966171168
          %v385 = vunpack.c.0.s8 %v384
          %v386 = vlaneseq
          %v387 = vshrl.u32 %v386, 7
          %v388 = vsub.s32 %v385, %v387
          %v389 = vrot.slane %v382, %v388
          %v391 = vunpack.c.l.s4 1966171168
          %v392 = vunpack.c.0.s8 %v391
          %v393 = vlaneseq
          %v394 = vshrl.u32 %v393, 7
          %v395 = vsub.s32 %v392, %v394
          %v396 = vrot.slane %v389, %v395
          %398 = vst [vmem:[#allocation2] sm:$0x3] %v396
          %v399 = vld [vmem:[%s5] sm:$0xf]
          %v400 = vld [vmem:[%s5 + $0x4] sm:$0xf]
          %v401 = vld [vmem:[%s6] sm:$0xff]
          %v402 = vld [vmem:[%s6 + $0x8] sm:$0xff]
          %404 = vset.pattern.permute.xlu0 0
          %405 = vperm.xlu0 %404, %v401
          %v406 = vpop.permute.xlu0 %405
          %409 = vset.pattern.permute.xlu0 0
          %410 = vperm.xlu0 %409, %v402
          %v411 = vpop.permute.xlu0 %410
          %v415 = vunpack.c.l.b16 %v399
          %v416 = vunpack.c.l.b16 %v400
          %v417 = vpack.c.b16 %v416, %v415
          %v419 = vsel %vm333, %v417, 0
          %421 = vmatprep.subr.bf16.mxu0 0
          %422 = vmatpush1.bf16.msra.mxu0 0
          %423 = vmatprep.subr.bf16.mxu0 0
          %424 = vmatpush1.bf16.msra.mxu0 0
          %425 = vmatprep.subr.bf16.mxu0 0
          %426 = vmatpush1.bf16.msra.mxu0 0
          %427 = vmatprep.subr.bf16.mxu0 0
          %428 = vmatpush1.bf16.msra.mxu0 0
          %429 = vmatprep.subr.bf16.mxu0 0
          %430 = vmatpush1.bf16.msra.mxu0 0
          %431 = vmatprep.subr.bf16.mxu0 0
          %432 = vmatpush1.bf16.msra.mxu0 0
          %433 = vmatprep.subr.bf16.mxu0 0
          %434 = vmatpush1.bf16.msra.mxu0 0
          %435 = vmatprep.subr.bf16.mxu0 %v325
          %436 = vmatpush1.bf16.msra.mxu0 %v324
          %437 = vmatprep.subr.bf16.mxu0 0
          %438 = vmatpush2.bf16.msra.mxu0 0
          %439 = vmatprep.subr.bf16.mxu0 0
          %440 = vmatpush2.bf16.msra.mxu0 0
          %441 = vmatprep.subr.bf16.mxu0 0
          %442 = vmatpush2.bf16.msra.mxu0 0
          %443 = vmatprep.subr.bf16.mxu0 0
          %444 = vmatpush2.bf16.msra.mxu0 0
          %445 = vmatprep.subr.bf16.mxu0 0
          %446 = vmatpush2.bf16.msra.mxu0 0
          %447 = vmatprep.subr.bf16.mxu0 0
          %448 = vmatpush2.bf16.msra.mxu0 0
          %449 = vmatprep.subr.bf16.mxu0 0
          %450 = vmatpush2.bf16.msra.mxu0 0
          %451 = vmatprep.subr.bf16.mxu0 0
          %452 = vmatpush2.bf16.msra.mxu0 0
          %453 = vmatprep.mubr.bf16.mxu0 0
          %454 = vmatmul.mubr.bf16.gmra.mxu0 %v419
          %v455 = vpop.f32.mrf.mxu0
          %v456 = vadd.f32 %v406, %v455
          %v457 = vpop.f32.mrf.mxu0
          %v458 = vadd.f32 %v406, %v457
          %v459 = vpop.f32.mrf.mxu0
          %v460 = vadd.f32 %v411, %v459
          %v461 = vpop.f32.mrf.mxu0
          %v462 = vadd.f32 %v411, %v461
          %463 = vdwg.mxu0
          %v464 = vpack.c.bf16 %v460, %v456
          %v465 = vpack.c.bf16 %v462, %v458
          %v468 = vunpack.c.l.b16 %v464
          %v469 = vunpack.c.l.b16 %v465
          %v470 = vunpack.c.h.b16 %v464
          %v471 = vunpack.c.h.b16 %v465
          %v472 = vpack.c.b16 %v469, %v468
          %v473 = vpack.c.b16 %v471, %v470
          %476 = vst [vmem:[#allocation4] sm:$0xff] %v472
          %477 = vst [vmem:[#allocation4 + $0x8] sm:$0xff] %v473
          %v478 = vld [vmem:[%s3] sm:$0xf]
          %v479 = vld [vmem:[%s3 + $0x4] sm:$0xf]
          %v480 = vld [vmem:[%s4] sm:$0x1]
          %v482 = vlaneseq
          %v483 = vshrl.u32 %v482, 7
          %v484 = vsub.s32 0, %v483
          %v485 = vrot.slane %v480, %v484
          %487 = vxpose.xlu0.c.b16.start [1/8] %v324, 128
          %488 = vxpose.xlu0.c.b16.cont [2/8] 0, 128
          %489 = vxpose.xlu0.c.b16.cont [3/8] 0, 128
          %490 = vxpose.xlu0.c.b16.cont [4/8] 0, 128
          %491 = vxpose.xlu0.c.b16.cont [5/8] 0, 128
          %492 = vxpose.xlu0.c.b16.cont [6/8] 0, 128
          %493 = vxpose.xlu0.c.b16.cont [7/8] 0, 128
          %494 = vxpose.xlu0.c.b16.end [8/8] 0, 128
          %v495 = vpop.trf.xlu0
          %v496 = vpop.trf.xlu0
          %v497 = vpop.trf.xlu0
          %v498 = vpop.trf.xlu0
          %v499 = vpop.trf.xlu0
          %v500 = vpop.trf.xlu0
          %v501 = vpop.trf.xlu0
          %v502 = vpop.trf.xlu0
          %503 = vxpose.xlu0.c.b16.start [1/8] %v325, 128
          %504 = vxpose.xlu0.c.b16.cont [2/8] 0, 128
          %505 = vxpose.xlu0.c.b16.cont [3/8] 0, 128
          %506 = vxpose.xlu0.c.b16.cont [4/8] 0, 128
          %507 = vxpose.xlu0.c.b16.cont [5/8] 0, 128
          %508 = vxpose.xlu0.c.b16.cont [6/8] 0, 128
          %509 = vxpose.xlu0.c.b16.cont [7/8] 0, 128
          %510 = vxpose.xlu0.c.b16.end [8/8] 0, 128
          %v511 = vpop.trf.xlu0
          %v512 = vpop.trf.xlu0
          %v513 = vpop.trf.xlu0
          %v514 = vpop.trf.xlu0
          %v515 = vpop.trf.xlu0
          %v516 = vpop.trf.xlu0
          %v517 = vpop.trf.xlu0
          %v518 = vpop.trf.xlu0
          %v521 = vunpack.c.l.b16 %v478
          %v522 = vunpack.c.l.b16 %v479
          %v523 = vpack.c.b16 %v522, %v521
          %v526 = vsel %vm333, %v495, 0
          %v529 = vsel %vm333, %v496, 0
          %v532 = vsel %vm333, %v497, 0
          %v535 = vsel %vm333, %v498, 0
          %v538 = vsel %vm333, %v499, 0
          %v541 = vsel %vm333, %v500, 0
          %v544 = vsel %vm333, %v501, 0
          %v547 = vsel %vm333, %v502, 0
          %v550 = vsel %vm333, %v511, 0
          %v553 = vsel %vm333, %v512, 0
          %v556 = vsel %vm333, %v513, 0
          %v559 = vsel %vm333, %v514, 0
          %v562 = vsel %vm333, %v515, 0
          %v565 = vsel %vm333, %v516, 0
          %v568 = vsel %vm333, %v517, 0
          %v571 = vsel %vm333, %v518, 0
          %573 = vmatprep.subr.bf16.mxu0 0
          %574 = vmatpush1.bf16.msra.mxu0 0
          %575 = vmatprep.subr.bf16.mxu0 0
          %576 = vmatpush1.bf16.msra.mxu0 0
          %577 = vmatprep.subr.bf16.mxu0 0
          %578 = vmatpush1.bf16.msra.mxu0 0
          %579 = vmatprep.subr.bf16.mxu0 0
          %580 = vmatpush1.bf16.msra.mxu0 0
          %581 = vmatprep.subr.bf16.mxu0 0
          %582 = vmatpush1.bf16.msra.mxu0 0
          %583 = vmatprep.subr.bf16.mxu0 0
          %584 = vmatpush1.bf16.msra.mxu0 0
          %585 = vmatprep.subr.bf16.mxu0 0
          %586 = vmatpush1.bf16.msra.mxu0 0
          %587 = vmatprep.subr.bf16.mxu0 0
          %588 = vmatpush1.bf16.msra.mxu0 %v523
          %589 = vmatprep.subr.bf16.mxu0 0
          %590 = vmatpush2.bf16.msra.mxu0 0
          %591 = vmatprep.subr.bf16.mxu0 0
          %592 = vmatpush2.bf16.msra.mxu0 0
          %593 = vmatprep.subr.bf16.mxu0 0
          %594 = vmatpush2.bf16.msra.mxu0 0
          %595 = vmatprep.subr.bf16.mxu0 0
          %596 = vmatpush2.bf16.msra.mxu0 0
          %597 = vmatprep.subr.bf16.mxu0 0
          %598 = vmatpush2.bf16.msra.mxu0 0
          %599 = vmatprep.subr.bf16.mxu0 0
          %600 = vmatpush2.bf16.msra.mxu0 0
          %601 = vmatprep.subr.bf16.mxu0 0
          %602 = vmatpush2.bf16.msra.mxu0 0
          %603 = vmatprep.subr.bf16.mxu0 0
          %604 = vmatpush2.bf16.msra.mxu0 0
          %605 = vmatprep.mubr.bf16.mxu0 0
          %606 = vmatmul.mubr.bf16.gmra.mxu0 %v526
          %v607 = vpop.f32.mrf.mxu0
          %v608 = vadd.f32 %v485, %v607
          %v609 = vpop.f32.mrf.mxu0
          %v610 = vpop.f32.mrf.mxu0
          %v611 = vadd.f32 %v485, %v610
          %v612 = vpop.f32.mrf.mxu0
          %613 = vmatprep.mubr.bf16.mxu0 0
          %614 = vmatmul.mubr.bf16.gmra.mxu0 %v529
          %v615 = vpop.f32.mrf.mxu0
          %v616 = vadd.f32 %v485, %v615
          %v617 = vpop.f32.mrf.mxu0
          %v618 = vpop.f32.mrf.mxu0
          %v619 = vadd.f32 %v485, %v618
          %v620 = vpop.f32.mrf.mxu0
          %621 = vmatprep.mubr.bf16.mxu0 0
          %622 = vmatmul.mubr.bf16.gmra.mxu0 %v532
          %v623 = vpop.f32.mrf.mxu0
          %v624 = vadd.f32 %v485, %v623
          %v625 = vpop.f32.mrf.mxu0
          %v626 = vpop.f32.mrf.mxu0
          %v627 = vadd.f32 %v485, %v626
          %v628 = vpop.f32.mrf.mxu0
          %629 = vmatprep.mubr.bf16.mxu0 0
          %630 = vmatmul.mubr.bf16.gmra.mxu0 %v535
          %v631 = vpop.f32.mrf.mxu0
          %v632 = vadd.f32 %v485, %v631
          %v633 = vpop.f32.mrf.mxu0
          %v634 = vpop.f32.mrf.mxu0
          %v635 = vadd.f32 %v485, %v634
          %v636 = vpop.f32.mrf.mxu0
          %637 = vmatprep.mubr.bf16.mxu0 0
          %638 = vmatmul.mubr.bf16.gmra.mxu0 %v538
          %v639 = vpop.f32.mrf.mxu0
          %v640 = vadd.f32 %v485, %v639
          %v641 = vpop.f32.mrf.mxu0
          %v642 = vpop.f32.mrf.mxu0
          %v643 = vadd.f32 %v485, %v642
          %v644 = vpop.f32.mrf.mxu0
          %645 = vmatprep.mubr.bf16.mxu0 0
          %646 = vmatmul.mubr.bf16.gmra.mxu0 %v541
          %v647 = vpop.f32.mrf.mxu0
          %v648 = vadd.f32 %v485, %v647
          %v649 = vpop.f32.mrf.mxu0
          %v650 = vpop.f32.mrf.mxu0
          %v651 = vadd.f32 %v485, %v650
          %v652 = vpop.f32.mrf.mxu0
          %653 = vmatprep.mubr.bf16.mxu0 0
          %654 = vmatmul.mubr.bf16.gmra.mxu0 %v544
          %v655 = vpop.f32.mrf.mxu0
          %v656 = vadd.f32 %v485, %v655
          %v657 = vpop.f32.mrf.mxu0
          %v658 = vpop.f32.mrf.mxu0
          %v659 = vadd.f32 %v485, %v658
          %v660 = vpop.f32.mrf.mxu0
          %661 = vmatprep.mubr.bf16.mxu0 0
          %662 = vmatmul.mubr.bf16.gmra.mxu0 %v547
          %v663 = vpop.f32.mrf.mxu0
          %v664 = vadd.f32 %v485, %v663
          %v665 = vpop.f32.mrf.mxu0
          %v666 = vpop.f32.mrf.mxu0
          %v667 = vadd.f32 %v485, %v666
          %v668 = vpop.f32.mrf.mxu0
          %669 = vmatprep.mubr.bf16.mxu0 0
          %670 = vmatmul.mubr.bf16.gmra.mxu0 %v550
          %v671 = vpop.f32.mrf.mxu0
          %v672 = vadd.f32 %v485, %v671
          %v673 = vpop.f32.mrf.mxu0
          %v674 = vpop.f32.mrf.mxu0
          %v675 = vadd.f32 %v485, %v674
          %v676 = vpop.f32.mrf.mxu0
          %677 = vmatprep.mubr.bf16.mxu0 0
          %678 = vmatmul.mubr.bf16.gmra.mxu0 %v553
          %v679 = vpop.f32.mrf.mxu0
          %v680 = vadd.f32 %v485, %v679
          %v681 = vpop.f32.mrf.mxu0
          %v682 = vpop.f32.mrf.mxu0
          %v683 = vadd.f32 %v485, %v682
          %v684 = vpop.f32.mrf.mxu0
          %685 = vmatprep.mubr.bf16.mxu0 0
          %686 = vmatmul.mubr.bf16.gmra.mxu0 %v556
          %v687 = vpop.f32.mrf.mxu0
          %v688 = vadd.f32 %v485, %v687
          %v689 = vpop.f32.mrf.mxu0
          %v690 = vpop.f32.mrf.mxu0
          %v691 = vadd.f32 %v485, %v690
          %v692 = vpop.f32.mrf.mxu0
          %693 = vmatprep.mubr.bf16.mxu0 0
          %694 = vmatmul.mubr.bf16.gmra.mxu0 %v559
          %v695 = vpop.f32.mrf.mxu0
          %v696 = vadd.f32 %v485, %v695
          %v697 = vpop.f32.mrf.mxu0
          %v698 = vpop.f32.mrf.mxu0
          %v699 = vadd.f32 %v485, %v698
          %v700 = vpop.f32.mrf.mxu0
          %701 = vmatprep.mubr.bf16.mxu0 0
          %702 = vmatmul.mubr.bf16.gmra.mxu0 %v562
          %v703 = vpop.f32.mrf.mxu0
          %v704 = vadd.f32 %v485, %v703
          %v705 = vpop.f32.mrf.mxu0
          %v706 = vpop.f32.mrf.mxu0
          %v707 = vadd.f32 %v485, %v706
          %v708 = vpop.f32.mrf.mxu0
          %709 = vmatprep.mubr.bf16.mxu0 0
          %710 = vmatmul.mubr.bf16.gmra.mxu0 %v565
          %v711 = vpop.f32.mrf.mxu0
          %v712 = vadd.f32 %v485, %v711
          %v713 = vpop.f32.mrf.mxu0
          %v714 = vpop.f32.mrf.mxu0
          %v715 = vadd.f32 %v485, %v714
          %v716 = vpop.f32.mrf.mxu0
          %717 = vmatprep.mubr.bf16.mxu0 0
          %718 = vmatmul.mubr.bf16.gmra.mxu0 %v568
          %v719 = vpop.f32.mrf.mxu0
          %v720 = vadd.f32 %v485, %v719
          %v721 = vpop.f32.mrf.mxu0
          %v722 = vpop.f32.mrf.mxu0
          %v723 = vadd.f32 %v485, %v722
          %v724 = vpop.f32.mrf.mxu0
          %725 = vmatprep.mubr.bf16.mxu0 0
          %726 = vmatmul.mubr.bf16.gmra.mxu0 %v571
          %v727 = vpop.f32.mrf.mxu0
          %v728 = vadd.f32 %v485, %v727
          %v729 = vpop.f32.mrf.mxu0
          %v730 = vpop.f32.mrf.mxu0
          %v731 = vadd.f32 %v485, %v730
          %v732 = vpop.f32.mrf.mxu0
          %733 = vdwg.mxu0
          %v734 = vpack.c.bf16 %v611, %v608
          %v735 = vpack.c.bf16 %v619, %v616
          %v736 = vpack.c.bf16 %v627, %v624
          %v737 = vpack.c.bf16 %v635, %v632
          %v738 = vpack.c.bf16 %v643, %v640
          %v739 = vpack.c.bf16 %v651, %v648
          %v740 = vpack.c.bf16 %v659, %v656
          %v741 = vpack.c.bf16 %v667, %v664
          %v742 = vpack.c.bf16 %v675, %v672
          %v743 = vpack.c.bf16 %v683, %v680
          %v744 = vpack.c.bf16 %v691, %v688
          %v745 = vpack.c.bf16 %v699, %v696
          %v746 = vpack.c.bf16 %v707, %v704
          %v747 = vpack.c.bf16 %v715, %v712
          %v748 = vpack.c.bf16 %v723, %v720
          %v749 = vpack.c.bf16 %v731, %v728
          %v766 = vunpack.c.l.b16 %v734
          %v767 = vunpack.c.h.b16 %v734
          %v768 = vunpack.c.l.b16 %v735
          %v769 = vunpack.c.h.b16 %v735
          %v770 = vunpack.c.l.b16 %v736
          %v771 = vunpack.c.h.b16 %v736
          %v772 = vunpack.c.l.b16 %v737
          %v773 = vunpack.c.h.b16 %v737
          %v774 = vunpack.c.l.b16 %v738
          %v775 = vunpack.c.h.b16 %v738
          %v776 = vunpack.c.l.b16 %v739
          %v777 = vunpack.c.h.b16 %v739
          %v778 = vunpack.c.l.b16 %v740
          %v779 = vunpack.c.h.b16 %v740
          %v780 = vunpack.c.l.b16 %v741
          %v781 = vunpack.c.h.b16 %v741
          %v782 = vunpack.c.l.b16 %v742
          %v783 = vunpack.c.h.b16 %v742
          %v784 = vunpack.c.l.b16 %v743
          %v785 = vunpack.c.h.b16 %v743
          %v786 = vunpack.c.l.b16 %v744
          %v787 = vunpack.c.h.b16 %v744
          %v788 = vunpack.c.l.b16 %v745
          %v789 = vunpack.c.h.b16 %v745
          %v790 = vunpack.c.l.b16 %v746
          %v791 = vunpack.c.h.b16 %v746
          %v792 = vunpack.c.l.b16 %v747
          %v793 = vunpack.c.h.b16 %v747
          %v794 = vunpack.c.l.b16 %v748
          %v795 = vunpack.c.h.b16 %v748
          %v796 = vunpack.c.l.b16 %v749
          %v797 = vunpack.c.h.b16 %v749
          %v798 = vpack.c.b16 %v766, %v766
          %v799 = vpack.c.b16 %v767, %v767
          %v800 = vpack.c.b16 %v768, %v768
          %v801 = vpack.c.b16 %v769, %v769
          %v802 = vpack.c.b16 %v770, %v770
          %v803 = vpack.c.b16 %v771, %v771
          %v804 = vpack.c.b16 %v772, %v772
          %v805 = vpack.c.b16 %v773, %v773
          %v806 = vpack.c.b16 %v774, %v774
          %v807 = vpack.c.b16 %v775, %v775
          %v808 = vpack.c.b16 %v776, %v776
          %v809 = vpack.c.b16 %v777, %v777
          %v810 = vpack.c.b16 %v778, %v778
          %v811 = vpack.c.b16 %v779, %v779
          %v812 = vpack.c.b16 %v780, %v780
          %v813 = vpack.c.b16 %v781, %v781
          %v814 = vpack.c.b16 %v782, %v782
          %v815 = vpack.c.b16 %v783, %v783
          %v816 = vpack.c.b16 %v784, %v784
          %v817 = vpack.c.b16 %v785, %v785
          %v818 = vpack.c.b16 %v786, %v786
          %v819 = vpack.c.b16 %v787, %v787
          %v820 = vpack.c.b16 %v788, %v788
          %v821 = vpack.c.b16 %v789, %v789
          %v822 = vpack.c.b16 %v790, %v790
          %v823 = vpack.c.b16 %v791, %v791
          %v824 = vpack.c.b16 %v792, %v792
          %v825 = vpack.c.b16 %v793, %v793
          %v826 = vpack.c.b16 %v794, %v794
          %v827 = vpack.c.b16 %v795, %v795
          %v828 = vpack.c.b16 %v796, %v796
          %v829 = vpack.c.b16 %v797, %v797
          %vm862 = vcmask 11264
          %863 = vst.msk [vmem:[#allocation3] sm:$0xf] %vm862, %v798
          %864 = vst.msk [vmem:[#allocation3 + $0x4] sm:$0xf] %vm862, %v799
          %865 = vst.msk [vmem:[#allocation3 + $0x8] sm:$0xf] %vm862, %v800
          %866 = vst.msk [vmem:[#allocation3 + $0xc] sm:$0xf] %vm862, %v801
          %867 = vst.msk [vmem:[#allocation3 + $0x10] sm:$0xf] %vm862, %v802
          %868 = vst.msk [vmem:[#allocation3 + $0x14] sm:$0xf] %vm862, %v803
          %869 = vst.msk [vmem:[#allocation3 + $0x18] sm:$0xf] %vm862, %v804
          %870 = vst.msk [vmem:[#allocation3 + $0x1c] sm:$0xf] %vm862, %v805
          %871 = vst.msk [vmem:[#allocation3 + $0x20] sm:$0xf] %vm862, %v806
          %872 = vst.msk [vmem:[#allocation3 + $0x24] sm:$0xf] %vm862, %v807
          %873 = vst.msk [vmem:[#allocation3 + $0x28] sm:$0xf] %vm862, %v808
          %874 = vst.msk [vmem:[#allocation3 + $0x2c] sm:$0xf] %vm862, %v809
          %875 = vst.msk [vmem:[#allocation3 + $0x30] sm:$0xf] %vm862, %v810
          %876 = vst.msk [vmem:[#allocation3 + $0x34] sm:$0xf] %vm862, %v811
          %877 = vst.msk [vmem:[#allocation3 + $0x38] sm:$0xf] %vm862, %v812
          %878 = vst.msk [vmem:[#allocation3 + $0x3c] sm:$0xf] %vm862, %v813
          %879 = vst.msk [vmem:[#allocation3 + $0x40] sm:$0xf] %vm862, %v814
          %880 = vst.msk [vmem:[#allocation3 + $0x44] sm:$0xf] %vm862, %v815
          %881 = vst.msk [vmem:[#allocation3 + $0x48] sm:$0xf] %vm862, %v816
          %882 = vst.msk [vmem:[#allocation3 + $0x4c] sm:$0xf] %vm862, %v817
          %883 = vst.msk [vmem:[#allocation3 + $0x50] sm:$0xf] %vm862, %v818
          %884 = vst.msk [vmem:[#allocation3 + $0x54] sm:$0xf] %vm862, %v819
          %885 = vst.msk [vmem:[#allocation3 + $0x58] sm:$0xf] %vm862, %v820
          %886 = vst.msk [vmem:[#allocation3 + $0x5c] sm:$0xf] %vm862, %v821
          %887 = vst.msk [vmem:[#allocation3 + $0x60] sm:$0xf] %vm862, %v822
          %888 = vst.msk [vmem:[#allocation3 + $0x64] sm:$0xf] %vm862, %v823
          %889 = vst.msk [vmem:[#allocation3 + $0x68] sm:$0xf] %vm862, %v824
          %890 = vst.msk [vmem:[#allocation3 + $0x6c] sm:$0xf] %vm862, %v825
          %891 = vst.msk [vmem:[#allocation3 + $0x70] sm:$0xf] %vm862, %v826
          %892 = vst.msk [vmem:[#allocation3 + $0x74] sm:$0xf] %vm862, %v827
          %893 = vst.msk [vmem:[#allocation3 + $0x78] sm:$0xf] %vm862, %v828
          %894 = vst.msk [vmem:[#allocation3 + $0x7c] sm:$0xf] %vm862, %v829
        $region56: #{pam_forward.1} parent=51 // pred_fallthru
          _
        %s895 = smul.u32 %s25, 128
        %s896 = sshra.s32 %s895, 7
        %s897 = sand.u32 %s895, 127
        %s898 = scalar_lea.vmem [#allocation2], %s896
        %v899 = vld [vmem:[%s898] sm:$0x1]
        %900 = vst [vmem:[#allocation5] sm:$0x1] -inf
        %901 = vst [vmem:[#allocation6] sm:$0x1] 0.0
        %902 = vst [vmem:[#allocation7] sm:$0xff] 0.0
        %903 = vst [vmem:[#allocation7 + $0x8] sm:$0xff] 0.0
        loop: start=0, step=1, limit=2
        $region57: #{pam_forward.1} parent=51 // loop_pre_header
          _
        $region58: #{pam_forward.1} parent=51 // loop_header
          %s905 = sphi 0, %s909
          %p906 = scmp.ge.s32.totalorder %s905, 2
        $region59: #{pam_forward.1} parent=51 // loop_header_branch
          %908 = sbr.rel (%p906) target = $region63
        $region60: #{pam_forward.1} parent=51 // loop_body
          %s910 = smul.u32 %s905, 128
          %s911 = sshra.s32 %s910, 3
          %s912 = sand.u32 %s910, 7
          %s913 = smul.addr %s911, 4
          %s914 = scalar_lea.vmem [#allocation3], %s913
          %v915 = vld [vmem:[%s914] sm:$0xf]
          %v916 = vld [vmem:[%s914 + $0x4] sm:$0xf]
          %v917 = vld [vmem:[%s914 + $0x8] sm:$0xf]
          %v918 = vld [vmem:[%s914 + $0xc] sm:$0xf]
          %v919 = vld [vmem:[%s914 + $0x10] sm:$0xf]
          %v920 = vld [vmem:[%s914 + $0x14] sm:$0xf]
          %v921 = vld [vmem:[%s914 + $0x18] sm:$0xf]
          %v922 = vld [vmem:[%s914 + $0x1c] sm:$0xf]
          %v923 = vld [vmem:[%s914 + $0x20] sm:$0xf]
          %v924 = vld [vmem:[%s914 + $0x24] sm:$0xf]
          %v925 = vld [vmem:[%s914 + $0x28] sm:$0xf]
          %v926 = vld [vmem:[%s914 + $0x2c] sm:$0xf]
          %v927 = vld [vmem:[%s914 + $0x30] sm:$0xf]
          %v928 = vld [vmem:[%s914 + $0x34] sm:$0xf]
          %v929 = vld [vmem:[%s914 + $0x38] sm:$0xf]
          %v930 = vld [vmem:[%s914 + $0x3c] sm:$0xf]
          %s931 = sshra.s32 %s910, 7
          %s932 = sand.u32 %s910, 127
          %s933 = smul.addr %s931, 4
          %s934 = scalar_lea.vmem [#allocation4], %s933
          %v935 = vld [vmem:[%s934] sm:$0xf]
          %v936 = vld [vmem:[%s934 + $0x8] sm:$0xf]
          %v953 = vunpack.c.l.b16 %v915
          %v954 = vunpack.c.l.b16 %v916
          %v955 = vunpack.c.l.b16 %v917
          %v956 = vunpack.c.l.b16 %v918
          %v957 = vunpack.c.l.b16 %v919
          %v958 = vunpack.c.l.b16 %v920
          %v959 = vunpack.c.l.b16 %v921
          %v960 = vunpack.c.l.b16 %v922
          %v961 = vunpack.c.l.b16 %v923
          %v962 = vunpack.c.l.b16 %v924
          %v963 = vunpack.c.l.b16 %v925
          %v964 = vunpack.c.l.b16 %v926
          %v965 = vunpack.c.l.b16 %v927
          %v966 = vunpack.c.l.b16 %v928
          %v967 = vunpack.c.l.b16 %v929
          %v968 = vunpack.c.l.b16 %v930
          %v969 = vpack.c.b16 %v954, %v953
          %v970 = vpack.c.b16 %v956, %v955
          %v971 = vpack.c.b16 %v958, %v957
          %v972 = vpack.c.b16 %v960, %v959
          %v973 = vpack.c.b16 %v962, %v961
          %v974 = vpack.c.b16 %v964, %v963
          %v975 = vpack.c.b16 %v966, %v965
          %v976 = vpack.c.b16 %v968, %v967
          %vm977 = vcmask 15360
          %v979 = vsel %vm977, %v969, 0
          %v982 = vsel %vm977, %v970, 0
          %v985 = vsel %vm977, %v971, 0
          %v988 = vsel %vm977, %v972, 0
          %v991 = vsel %vm977, %v973, 0
          %v994 = vsel %vm977, %v974, 0
          %v997 = vsel %vm977, %v975, 0
          %v1000 = vsel %vm977, %v976, 0
          %vm1002 = vcmask 1040384
          %v1004 = vsel %vm1002, %v899, 0
          %1006 = vmatprep.subr.bf16.mxu0 0
          %1007 = vmatpush1.bf16.msra.mxu0 0
          %1008 = vmatprep.subr.bf16.mxu0 0
          %1009 = vmatpush1.bf16.msra.mxu0 0
          %1010 = vmatprep.subr.bf16.mxu0 0
          %1011 = vmatpush1.bf16.msra.mxu0 0
          %1012 = vmatprep.subr.bf16.mxu0 0
          %1013 = vmatpush1.bf16.msra.mxu0 0
          %1014 = vmatprep.subr.bf16.mxu0 0
          %1015 = vmatpush1.bf16.msra.mxu0 0
          %1016 = vmatprep.subr.bf16.mxu0 0
          %1017 = vmatpush1.bf16.msra.mxu0 0
          %1018 = vmatprep.subr.bf16.mxu0 0
          %1019 = vmatpush1.bf16.msra.mxu0 0
          %1020 = vmatprep.subr.bf16.mxu0 0
          %1021 = vmatpush1.bf16.msra.mxu0 %v1004
          %1022 = vmatprep.subr.bf16.mxu0 0
          %1023 = vmatpush2.bf16.msra.mxu0 0
          %1024 = vmatprep.subr.bf16.mxu0 0
          %1025 = vmatpush2.bf16.msra.mxu0 0
          %1026 = vmatprep.subr.bf16.mxu0 0
          %1027 = vmatpush2.bf16.msra.mxu0 0
          %1028 = vmatprep.subr.bf16.mxu0 0
          %1029 = vmatpush2.bf16.msra.mxu0 0
          %1030 = vmatprep.subr.bf16.mxu0 0
          %1031 = vmatpush2.bf16.msra.mxu0 0
          %1032 = vmatprep.subr.bf16.mxu0 0
          %1033 = vmatpush2.bf16.msra.mxu0 0
          %1034 = vmatprep.subr.bf16.mxu0 0
          %1035 = vmatpush2.bf16.msra.mxu0 0
          %1036 = vmatprep.subr.bf16.mxu0 0
          %1037 = vmatpush2.bf16.msra.mxu0 0
          %1038 = vmatprep.mubr.bf16.mxu0 0
          %1039 = vmatmul.mubr.bf16.gmra.mxu0 %v979
          %v1040 = vpop.f32.mrf.mxu0
          %v1041 = vadd.f32 0.0, %v1040
          %v1042 = vpop.f32.mrf.mxu0
          %v1043 = vpop.f32.mrf.mxu0
          %v1044 = vadd.f32 0.0, %v1043
          %v1045 = vpop.f32.mrf.mxu0
          %1046 = vmatprep.mubr.bf16.mxu0 0
          %1047 = vmatmul.mubr.bf16.gmra.mxu0 %v982
          %v1048 = vpop.f32.mrf.mxu0
          %v1049 = vadd.f32 0.0, %v1048
          %v1050 = vpop.f32.mrf.mxu0
          %v1051 = vpop.f32.mrf.mxu0
          %v1052 = vadd.f32 0.0, %v1051
          %v1053 = vpop.f32.mrf.mxu0
          %1054 = vmatprep.mubr.bf16.mxu0 0
          %1055 = vmatmul.mubr.bf16.gmra.mxu0 %v985
          %v1056 = vpop.f32.mrf.mxu0
          %v1057 = vadd.f32 0.0, %v1056
          %v1058 = vpop.f32.mrf.mxu0
          %v1059 = vpop.f32.mrf.mxu0
          %v1060 = vadd.f32 0.0, %v1059
          %v1061 = vpop.f32.mrf.mxu0
          %1062 = vmatprep.mubr.bf16.mxu0 0
          %1063 = vmatmul.mubr.bf16.gmra.mxu0 %v988
          %v1064 = vpop.f32.mrf.mxu0
          %v1065 = vadd.f32 0.0, %v1064
          %v1066 = vpop.f32.mrf.mxu0
          %v1067 = vpop.f32.mrf.mxu0
          %v1068 = vadd.f32 0.0, %v1067
          %v1069 = vpop.f32.mrf.mxu0
          %1070 = vmatprep.mubr.bf16.mxu0 0
          %1071 = vmatmul.mubr.bf16.gmra.mxu0 %v991
          %v1072 = vpop.f32.mrf.mxu0
          %v1073 = vadd.f32 0.0, %v1072
          %v1074 = vpop.f32.mrf.mxu0
          %v1075 = vpop.f32.mrf.mxu0
          %v1076 = vadd.f32 0.0, %v1075
          %v1077 = vpop.f32.mrf.mxu0
          %1078 = vmatprep.mubr.bf16.mxu0 0
          %1079 = vmatmul.mubr.bf16.gmra.mxu0 %v994
          %v1080 = vpop.f32.mrf.mxu0
          %v1081 = vadd.f32 0.0, %v1080
          %v1082 = vpop.f32.mrf.mxu0
          %v1083 = vpop.f32.mrf.mxu0
          %v1084 = vadd.f32 0.0, %v1083
          %v1085 = vpop.f32.mrf.mxu0
          %1086 = vmatprep.mubr.bf16.mxu0 0
          %1087 = vmatmul.mubr.bf16.gmra.mxu0 %v997
          %v1088 = vpop.f32.mrf.mxu0
          %v1089 = vadd.f32 0.0, %v1088
          %v1090 = vpop.f32.mrf.mxu0
          %v1091 = vpop.f32.mrf.mxu0
          %v1092 = vadd.f32 0.0, %v1091
          %v1093 = vpop.f32.mrf.mxu0
          %1094 = vmatprep.mubr.bf16.mxu0 0
          %1095 = vmatmul.mubr.bf16.gmra.mxu0 %v1000
          %v1096 = vpop.f32.mrf.mxu0
          %v1097 = vadd.f32 0.0, %v1096
          %v1098 = vpop.f32.mrf.mxu0
          %v1099 = vpop.f32.mrf.mxu0
          %v1100 = vadd.f32 0.0, %v1099
          %v1101 = vpop.f32.mrf.mxu0
          %1102 = vdwg.mxu0
          %v1103 = vld [vmem:[#allocation5] sm:$0x1]
          %v1104 = vmax.f32 %v1041, %v1057
          %v1105 = vmax.f32 %v1044, %v1060
          %v1106 = vmax.f32 %v1049, %v1065
          %v1107 = vmax.f32 %v1052, %v1068
          %v1108 = vmax.f32 %v1104, %v1073
          %v1109 = vmax.f32 %v1105, %v1076
          %v1110 = vmax.f32 %v1106, %v1081
          %v1111 = vmax.f32 %v1107, %v1084
          %v1112 = vmax.f32 %v1108, %v1089
          %v1113 = vmax.f32 %v1109, %v1092
          %v1114 = vmax.f32 %v1110, %v1097
          %v1115 = vmax.f32 %v1111, %v1100
          %v1116 = vmax.f32 %v1112, %v1113
          %v1117 = vmax.f32 %v1114, %v1115
          %v1118 = vmax.f32 %v1116, %v1117
          %v1119 = vrot.slane %v1118, 4
          %v1120 = vmax.f32 %v1118, %v1119
          %v1121 = vrot.slane %v1120, 2
          %v1122 = vmax.f32 %v1120, %v1121
          %v1123 = vrot.slane %v1122, 1
          %v1124 = vmax.f32 %v1122, %v1123
          %v1125 = vmax.f32 %v1103, %v1124
          %v1126 = vsub.f32 %v1103, %v1125
          %v1127 = vmul.f32 %v1126, 1.442695
          %v1128 = vpow.pop %v1127
          %v1130 = vlaneseq
          %v1131 = vshrl.u32 %v1130, 7
          %v1132 = vsub.s32 0, %v1131
          %v1133 = vrot.slane %v1125, %v1132
          %v1135 = vsub.f32 %v1041, %v1133
          %v1136 = vsub.f32 %v1044, %v1133
          %v1137 = vsub.f32 %v1049, %v1133
          %v1138 = vsub.f32 %v1052, %v1133
          %v1139 = vsub.f32 %v1057, %v1133
          %v1140 = vsub.f32 %v1060, %v1133
          %v1141 = vsub.f32 %v1065, %v1133
          %v1142 = vsub.f32 %v1068, %v1133
          %v1143 = vsub.f32 %v1073, %v1133
          %v1144 = vsub.f32 %v1076, %v1133
          %v1145 = vsub.f32 %v1081, %v1133
          %v1146 = vsub.f32 %v1084, %v1133
          %v1147 = vsub.f32 %v1089, %v1133
          %v1148 = vsub.f32 %v1092, %v1133
          %v1149 = vsub.f32 %v1097, %v1133
          %v1150 = vsub.f32 %v1100, %v1133
          %v1151 = vmul.f32 %v1135, 1.442695
          %v1152 = vpow.pop %v1151
          %v1153 = vmul.f32 %v1136, 1.442695
          %v1154 = vpow.pop %v1153
          %v1155 = vmul.f32 %v1137, 1.442695
          %v1156 = vpow.pop %v1155
          %v1157 = vmul.f32 %v1138, 1.442695
          %v1158 = vpow.pop %v1157
          %v1159 = vmul.f32 %v1139, 1.442695
          %v1160 = vpow.pop %v1159
          %v1161 = vmul.f32 %v1140, 1.442695
          %v1162 = vpow.pop %v1161
          %v1163 = vmul.f32 %v1141, 1.442695
          %v1164 = vpow.pop %v1163
          %v1165 = vmul.f32 %v1142, 1.442695
          %v1166 = vpow.pop %v1165
          %v1167 = vmul.f32 %v1143, 1.442695
          %v1168 = vpow.pop %v1167
          %v1169 = vmul.f32 %v1144, 1.442695
          %v1170 = vpow.pop %v1169
          %v1171 = vmul.f32 %v1145, 1.442695
          %v1172 = vpow.pop %v1171
          %v1173 = vmul.f32 %v1146, 1.442695
          %v1174 = vpow.pop %v1173
          %v1175 = vmul.f32 %v1147, 1.442695
          %v1176 = vpow.pop %v1175
          %v1177 = vmul.f32 %v1148, 1.442695
          %v1178 = vpow.pop %v1177
          %v1179 = vmul.f32 %v1149, 1.442695
          %v1180 = vpow.pop %v1179
          %v1181 = vmul.f32 %v1150, 1.442695
          %v1182 = vpow.pop %v1181
          %v1183 = vld [vmem:[#allocation6] sm:$0x1]
          %v1184 = vmul.f32 %v1128, %v1183
          %v1185 = vadd.f32 %v1152, %v1154
          %v1186 = vadd.f32 %v1185, %v1156
          %v1187 = vadd.f32 %v1186, %v1158
          %v1188 = vadd.f32 %v1187, %v1160
          %v1189 = vadd.f32 %v1188, %v1162
          %v1190 = vadd.f32 %v1189, %v1164
          %v1191 = vadd.f32 %v1190, %v1166
          %v1192 = vadd.f32 %v1191, %v1168
          %v1193 = vadd.f32 %v1192, %v1170
          %v1194 = vadd.f32 %v1193, %v1172
          %v1195 = vadd.f32 %v1194, %v1174
          %v1196 = vadd.f32 %v1195, %v1176
          %v1197 = vadd.f32 %v1196, %v1178
          %v1198 = vadd.f32 %v1197, %v1180
          %v1199 = vadd.f32 %v1198, %v1182
          %v1200 = vrot.slane %v1199, 4
          %v1201 = vadd.f32 %v1199, %v1200
          %v1202 = vrot.slane %v1201, 2
          %v1203 = vadd.f32 %v1201, %v1202
          %v1204 = vrot.slane %v1203, 1
          %v1205 = vadd.f32 %v1203, %v1204
          %v1206 = vadd.f32 %v1184, %v1205
          %1207 = vst [vmem:[#allocation6] sm:$0x1] %v1206
          %v1208 = vld [vmem:[#allocation7] sm:$0xff]
          %v1209 = vld [vmem:[#allocation7 + $0x8] sm:$0xff]
          %v1211 = vlaneseq
          %v1212 = vshrl.u32 %v1211, 7
          %v1213 = vsub.s32 0, %v1212
          %v1214 = vrot.slane %v1128, %v1213
          %v1216 = vmul.f32 %v1214, %v1208
          %v1217 = vmul.f32 %v1214, %v1209
          %v1218 = vpack.c.bf16 %v1154, %v1152
          %v1219 = vpack.c.bf16 %v1158, %v1156
          %v1220 = vpack.c.bf16 %v1162, %v1160
          %v1221 = vpack.c.bf16 %v1166, %v1164
          %v1222 = vpack.c.bf16 %v1170, %v1168
          %v1223 = vpack.c.bf16 %v1174, %v1172
          %v1224 = vpack.c.bf16 %v1178, %v1176
          %v1225 = vpack.c.bf16 %v1182, %v1180
          %v1228 = vunpack.c.l.b16 %v935
          %v1229 = vunpack.c.l.b16 %v936
          %v1230 = vpack.c.b16 %v1229, %v1228
          %1232 = vmatprep.subr.bf16.mxu0 0
          %1233 = vmatpush1.bf16.msra.mxu0 %v1225
          %1234 = vmatprep.subr.bf16.mxu0 0
          %1235 = vmatpush1.bf16.msra.mxu0 %v1224
          %1236 = vmatprep.subr.bf16.mxu0 0
          %1237 = vmatpush1.bf16.msra.mxu0 %v1223
          %1238 = vmatprep.subr.bf16.mxu0 0
          %1239 = vmatpush1.bf16.msra.mxu0 %v1222
          %1240 = vmatprep.subr.bf16.mxu0 0
          %1241 = vmatpush1.bf16.msra.mxu0 %v1221
          %1242 = vmatprep.subr.bf16.mxu0 0
          %1243 = vmatpush1.bf16.msra.mxu0 %v1220
          %1244 = vmatprep.subr.bf16.mxu0 0
          %1245 = vmatpush1.bf16.msra.mxu0 %v1219
          %1246 = vmatprep.subr.bf16.mxu0 0
          %1247 = vmatpush1.bf16.msra.mxu0 %v1218
          %1248 = vmatprep.subr.bf16.mxu0 0
          %1249 = vmatpush2.bf16.msra.mxu0 0
          %1250 = vmatprep.subr.bf16.mxu0 0
          %1251 = vmatpush2.bf16.msra.mxu0 0
          %1252 = vmatprep.subr.bf16.mxu0 0
          %1253 = vmatpush2.bf16.msra.mxu0 0
          %1254 = vmatprep.subr.bf16.mxu0 0
          %1255 = vmatpush2.bf16.msra.mxu0 0
          %1256 = vmatprep.subr.bf16.mxu0 0
          %1257 = vmatpush2.bf16.msra.mxu0 0
          %1258 = vmatprep.subr.bf16.mxu0 0
          %1259 = vmatpush2.bf16.msra.mxu0 0
          %1260 = vmatprep.subr.bf16.mxu0 0
          %1261 = vmatpush2.bf16.msra.mxu0 0
          %1262 = vmatprep.subr.bf16.mxu0 0
          %1263 = vmatpush2.bf16.msra.mxu0 0
          %1264 = vmatprep.mubr.bf16.mxu0 0
          %1265 = vmatmul.mubr.bf16.gmra.mxu0 %v1230
          %v1266 = vpop.f32.mrf.mxu0
          %v1267 = vadd.f32 0.0, %v1266
          %v1268 = vpop.f32.mrf.mxu0
          %v1269 = vpop.f32.mrf.mxu0
          %v1270 = vadd.f32 0.0, %v1269
          %v1271 = vpop.f32.mrf.mxu0
          %1272 = vdwg.mxu0
          %v1273 = vadd.f32 %v1216, %v1267
          %v1274 = vadd.f32 %v1217, %v1270
          %1275 = vst [vmem:[#allocation7] sm:$0xff] %v1273
          %1276 = vst [vmem:[#allocation7 + $0x8] sm:$0xff] %v1274
          %1277 = vst [vmem:[#allocation5] sm:$0x1] %v1125
        $region61: #{pam_forward.1} parent=51 // loop_footer
          %s909 = sadd.s32 1, %s905
        $region62: #{pam_forward.1} parent=51 // loop_footer_branch
          %904 = sbr.rel target = $region58
        $region63: #{pam_forward.1} parent=51 // loop_exit
          _
        %v1278 = vld [vmem:[#allocation6] sm:$0x1]
        %v1279 = vrcp.pop %v1278
        %s1280 = sld [smem:[#allocation8]]
        %s1281 = smul.addr %s896, 8
        %s1282 = scalar_lea.vmem %s314, %s1281
        %v1283 = vld [vmem:[%s1282] sm:$0xff]
        %v1284 = vld [vmem:[%s1282 + $0x10] sm:$0xff]
        %v1285 = vld [vmem:[#allocation7] sm:$0xff]
        %v1286 = vld [vmem:[#allocation7 + $0x8] sm:$0xff]
        %v1288 = vlaneseq
        %v1289 = vshrl.u32 %v1288, 7
        %v1290 = vsub.s32 0, %v1289
        %v1291 = vrot.slane %v1279, %v1290
        %v1293 = vmul.f32 %v1285, %v1291
        %v1294 = vmul.f32 %v1286, %v1291
        %v1295 = vstv %s1280
        %v1296 = vmul.f32 %v1295, %v1293
        %v1297 = vmul.f32 %v1295, %v1294
        %v1298 = vadd.f32 %v1296, %v1283
        %v1299 = vadd.f32 %v1297, %v1284
        %1300 = vst [vmem:[%s309] sm:$0xff] %v1298
        %1301 = vst [vmem:[%s309 + $0x8] sm:$0xff] %v1299
        %s1302 = sand.u32 %s215, 1
        %s1303 = sand.u32 %s215, 1
        %s1304 = smul.addr %s1303, 16
        %s1305 = scalar_lea.vmem [#allocation9], %s1304
        // Predicated region
        $region64: #{pam_forward.1} parent=51 // pred_check
          %p1306 = pneg %p225
        $region65: #{pam_forward.1} parent=51 // pred_check_branch
          %1308 = sbr.rel (%p1306) target = $region67
        $region66: #{pam_forward.1} parent=51 // pred_region
          %s1309 = smul.addr %s24, 4
          %s1310 = sadd.s32 %s25, %s1309
          %s1311 = smul.addr %s1310, 8
          %s1312 = scalar_lea.vmem %s8, %s1311
          // Predicated region
          $region68: #{pam_forward.1} parent=66 // pred_check
            _
          $region69: #{pam_forward.1} parent=66 // pred_check_branch
            %1314 = sbr.rel (0) target = $region71
          $region70: #{pam_forward.1} parent=66 // pred_region
            // Predicated region
            $region72: #{pam_forward.1} parent=70 // pred_check
              _
            $region73: #{pam_forward.1} parent=70 // pred_check_branch
              %1316 = sbr.rel (0) target = $region75
            $region74: #{pam_forward.1} parent=70 // pred_region
              // Predicated region
              $region87: #{pam_forward.1} parent=74 // pred_check
                _
              $region88: #{pam_forward.1} parent=74 // pred_check_branch
                %1334 = sbr.rel (0) target = $region90
              $region89: #{pam_forward.1} parent=74 // pred_region
                loop: start=0, step=1, limit=1
                $region91: #{pam_forward.1} parent=89 // loop_pre_header
                  _
                $region92: #{pam_forward.1} parent=89 // loop_header
                  %s1336 = sphi 0, %s1340
                  %p1337 = scmp.ge.s32.totalorder %s1336, 1
                  %s1341 = sphi %s1305, %s1305
                  %s1342 = sphi %s1312, %s1312
                $region93: #{pam_forward.1} parent=89 // loop_header_branch
                  %1339 = sbr.rel (%p1337) target = $region97
                $region94: #{pam_forward.1} parent=89 // loop_body
                  %v1343 = vld [vmem:[%s1341] sm:$0xff]
                  %1344 = vst [vmem:[%s1342] sm:$0xff] %v1343
                  %v1345 = vld [vmem:[%s1341 + $0x8] sm:$0xff]
                  %1346 = vst [vmem:[%s1342 + $0x10] sm:$0xff] %v1345
                $region95: #{pam_forward.1} parent=89 // loop_footer
                  %s1340 = sadd.s32 1, %s1336
                $region96: #{pam_forward.1} parent=89 // loop_footer_branch
                  %1335 = sbr.rel target = $region92
                $region97: #{pam_forward.1} parent=89 // loop_exit
                  _
              $region90: #{pam_forward.1} parent=74 // pred_fallthru
                _
              // Predicated region
              $region98: #{pam_forward.1} parent=74 // pred_check
                _
              $region99: #{pam_forward.1} parent=74 // pred_check_branch
                %1348 = sbr.rel target = $region101
              $region100: #{pam_forward.1} parent=74 // pred_region
                _
              $region101: #{pam_forward.1} parent=74 // pred_fallthru
                _
            $region75: #{pam_forward.1} parent=70 // pred_fallthru
              _
            // Predicated region
            $region76: #{pam_forward.1} parent=70 // pred_check
              _
            $region77: #{pam_forward.1} parent=70 // pred_check_branch
              %1318 = sbr.rel target = $region79
            $region78: #{pam_forward.1} parent=70 // pred_region
              %s1320 = ssub.s32 256, 1
              loop: start=0, step=1, limit=1
              $region80: #{pam_forward.1} parent=78 // loop_pre_header
                _
              $region81: #{pam_forward.1} parent=78 // loop_header
                %s1322 = sphi 0, %s1326
                %p1323 = scmp.ge.s32.totalorder %s1322, 1
                %s1327 = sphi %s1305, %s1305
                %s1328 = sphi %s1312, %s1312
              $region82: #{pam_forward.1} parent=78 // loop_header_branch
                %1325 = sbr.rel (%p1323) target = $region86
              $region83: #{pam_forward.1} parent=78 // loop_body
                %v1329 = vld [vmem:[%s1327] sm:%s1320]
                %1330 = vst [vmem:[%s1328] sm:%s1320] %v1329
                %v1331 = vld [vmem:[%s1327 + $0x8] sm:%s1320]
                %1332 = vst [vmem:[%s1328 + $0x10] sm:%s1320] %v1331
              $region84: #{pam_forward.1} parent=78 // loop_footer
                %s1326 = sadd.s32 1, %s1322
              $region85: #{pam_forward.1} parent=78 // loop_footer_branch
                %1321 = sbr.rel target = $region81
              $region86: #{pam_forward.1} parent=78 // loop_exit
                _
            $region79: #{pam_forward.1} parent=70 // pred_fallthru
              _
          $region71: #{pam_forward.1} parent=66 // pred_fallthru
            _
          %1349 = vnop
        $region67: #{pam_forward.1} parent=51 // pred_fallthru
          _
      $region52: #{pam_forward.1} parent=5 // pred_fallthru
        _
      %p1350 = scmp.le.s32.totalorder 2, %s15
      // Predicated region
      $region102: #{pam_forward.1} parent=5 // pred_check
        %p1351 = pneg %p1350
      $region103: #{pam_forward.1} parent=5 // pred_check_branch
        %1353 = sbr.rel (%p1351) target = $region105
      $region104: #{pam_forward.1} parent=5 // pred_region
        %s1354 = ssub.s32 %s15, 2
        // Predicated region
        $region106: #{pam_forward.1} parent=104 // pred_check
          %p1355 = pneg %p231
        $region107: #{pam_forward.1} parent=104 // pred_check_branch
          %1357 = sbr.rel (%p1355) target = $region109
        $region108: #{pam_forward.1} parent=104 // pred_region
          %s1358 = sand.u32 %s216, 1
          %s1359 = sand.u32 %s216, 1
          %s1360 = smul.addr %s1359, 16
          %s1361 = scalar_lea.vmem [#allocation9], %s1360
        $region109: #{pam_forward.1} parent=104 // pred_fallthru
          _
      $region105: #{pam_forward.1} parent=5 // pred_fallthru
        _
    $region6: #{pam_forward.1} parent=1 // loop_footer
      %s19 = sadd.s32 1, %s15
    $region7: #{pam_forward.1} parent=1 // loop_footer_branch
      %14 = sbr.rel target = $region3
    $region8: #{pam_forward.1} parent=1 // loop_exit
      _

</llo_original>
